<compile_context>
chip_gen: v7x
topology: tpu7x:2x2x1
jax: 0.10.0
libtpu: 0.0.40
codegen_flags: <defaults>
</compile_context>

<pallas_src>
import functools

import jax
import jax.numpy as jnp
from jax.experimental import pallas as pl
from jax.experimental.pallas import tpu as pltpu

# Keep f32 matmuls at full precision so the kernel and the pure-JAX reference agree.
jax.config.update("jax_default_matmul_precision", "highest")


# ---------------------------------------------------------------------------
# Kernel
# ---------------------------------------------------------------------------
def _adapter_critic_kernel(x_ref, a_ref,
                           w1x_ref, w1a_ref, b1_ref,
                           w2_ref, b2_ref,
                           wf_ref, bf_ref,
                           out_ref, *, hidden):
    # Fused first layer: [xa @ W1m | ca @ W1a] == x @ W1x + a @ W1a_pack  (2H wide)
    h1 = jnp.dot(x_ref[...], w1x_ref[...], preferred_element_type=jnp.float32)
    h1 = h1 + jnp.dot(a_ref[...], w1a_ref[...], preferred_element_type=jnp.float32)
    h1 = jnp.maximum(h1 + b1_ref[...], 0.0)

    # Fused second layer: blockdiag(W2m, W2a), still 2H wide.
    h2 = jnp.dot(h1, w2_ref[...], preferred_element_type=jnp.float32)
    h2 = jnp.maximum(h2 + b2_ref[...], 0.0)

    # Split lanes into the two branches and combine.
    features = h2[:, :hidden] * h2[:, hidden:]          # (TB, H)

    # Final Linear(H, 1) as VPU multiply + XLU lane reduction (avoids N=1 MXU op).
    out = jnp.sum(features * wf_ref[...], axis=-1, keepdims=True) + bf_ref[...]
    out_ref[...] = out.astype(out_ref.dtype)


# ---------------------------------------------------------------------------
# Wrapper
# ---------------------------------------------------------------------------
def _round_up(n, m):
    return ((n + m - 1) // m) * m


def adapter_critic_contextualize(x, a, packed, *, block_b=512):
    """x: (B, obs_dim), a: (B, act_dim) -> (B, 1)."""
    B, obs_dim = x.shape
    act_dim = a.shape[1]
    two_h = packed["w1x"].shape[1]
    hidden = two_h // 2

    # Batch tile: multiple of 8 (sublane), capped at block_b; pad B up to a multiple.
    tb = min(block_b, _round_up(B, 8))
    bp = _round_up(B, tb)
    if bp != B:
        pad = bp - B
        x = jnp.pad(x, ((0, pad), (0, 0)))
        a = jnp.pad(a, ((0, pad), (0, 0)))

    grid = (bp // tb,)

    act_spec = lambda arr: pl.BlockSpec((tb, arr.shape[1]), lambda i: (i, 0))
    const_spec = lambda arr: pl.BlockSpec(arr.shape, lambda i: (0,) * arr.ndim)

    operands = (x, a,
                packed["w1x"], packed["w1a"], packed["b1"],
                packed["w2"], packed["b2"],
                packed["wf"], packed["bf"])
    in_specs = [act_spec(x), act_spec(a)] + [const_spec(op) for op in operands[2:]]

    flops = 2 * bp * two_h * (obs_dim + act_dim + two_h) + 4 * bp * two_h
    bytes_accessed = 4 * (bp * (obs_dim + act_dim + 1)
                          + sum(int(op.size) for op in operands[2:]))

    out = pl.pallas_call(
        functools.partial(_adapter_critic_kernel, hidden=hidden),
        out_shape=jax.ShapeDtypeStruct((bp, 1), jnp.float32),
        grid=grid,
        in_specs=in_specs,
        out_specs=pl.BlockSpec((tb, 1), lambda i: (i, 0)),
        compiler_params=pltpu.CompilerParams(
            dimension_semantics=("parallel",)),
        cost_estimate=pl.CostEstimate(flops=flops, transcendentals=0,
                                      bytes_accessed=bytes_accessed),
    )(*operands)

    return out[:B]


# ---------------------------------------------------------------------------
# Parameter construction / packing
# ---------------------------------------------------------------------------
def init_params(key, state_dim, act_dim, context_dim, hidden=32):
    """Deterministic synthetic parameters (no checkpoint load)."""
    ks = jax.random.split(key, 5)
    ins_model = state_dim + act_dim            # obs_dim + act_dim - context_dim
    ins_adapter = context_dim + act_dim

    def lin(k, fan_in, fan_out):
        w = jax.random.normal(k, (fan_in, fan_out), jnp.float32) / jnp.sqrt(fan_in)
        b = jnp.zeros((1, fan_out), jnp.float32)
        return w, b

    w1m, b1m = lin(ks[0], ins_model, hidden)
    w2m, b2m = lin(ks[1], hidden, hidden)
    w1a, b1a = lin(ks[2], ins_adapter, hidden)
    w2a, b2a = lin(ks[3], hidden, hidden)
    wf, bf = lin(ks[4], hidden, 1)
    return dict(w1m=w1m, b1m=b1m, w2m=w2m, b2m=b2m,
                w1a=w1a, b1a=b1a, w2a=w2a, b2a=b2a, wf=wf, bf=bf)


def pack_params(p, state_dim, context_dim, hidden=32):
    """Pack the two branch MLPs into block-diagonal weights so the kernel needs no concat."""
    H = hidden
    obs_dim = state_dim + context_dim

    # First layer, split by input stream:
    #   x   (obs_dim) -> model cols use xs rows, adapter cols use ctx rows
    #   a   (act_dim) -> both branches use their action rows
    w1x = jnp.zeros((obs_dim, 2 * H), jnp.float32)
    w1x = w1x.at[:state_dim, :H].set(p["w1m"][:state_dim])          # xs  -> model branch
    w1x = w1x.at[state_dim:, H:].set(p["w1a"][:context_dim])        # ctx -> adapter branch
    w1a = jnp.concatenate([p["w1m"][state_dim:], p["w1a"][context_dim:]], axis=1)
    b1 = jnp.concatenate([p["b1m"], p["b1a"]], axis=1)               # (1, 2H)

    # Second layer: blockdiag(W2m, W2a)
    w2 = jnp.zeros((2 * H, 2 * H), jnp.float32)
    w2 = w2.at[:H, :H].set(p["w2m"])
    w2 = w2.at[H:, H:].set(p["w2a"])
    b2 = jnp.concatenate([p["b2m"], p["b2a"]], axis=1)               # (1, 2H)

    wf_row = p["wf"].T                                               # (1, H)
    bf = p["bf"]                                                     # (1, 1)
    return dict(w1x=w1x, w1a=w1a, b1=b1, w2=w2, b2=b2, wf=wf_row, bf=bf)


# ---------------------------------------------------------------------------
# Pure-JAX reference (mirrors the PyTorch module exactly)
# ---------------------------------------------------------------------------
def _reference(x, a, p, context_dim):
    ctx = x[:, -context_dim:]
    xs = x[:, :-context_dim]
    xa = jnp.concatenate([xs, a], axis=1)
    ca = jnp.concatenate([ctx, a], axis=1)
    relu = lambda v: jnp.maximum(v, 0.0)
    sv = relu(relu(xa @ p["w1m"] + p["b1m"]) @ p["w2m"] + p["b2m"])
    cv = relu(relu(ca @ p["w1a"] + p["b1a"]) @ p["w2a"] + p["b2a"])
    return (sv * cv) @ p["wf"] + p["bf"]


if __name__ == "__main__":
    context_dim = 4
    state_dim = 8                 # env observation includes the context -> obs_dim = 12
    act_dim = 4
    hidden = 32
    obs_dim = state_dim + context_dim

    key = jax.random.PRNGKey(0)
    kx, ka, kp, kx2, ka2 = jax.random.split(key, 5)
    params = init_params(kp, state_dim, act_dim, context_dim, hidden=hidden)
    packed = pack_params(params, state_dim, context_dim, hidden=hidden)

    # --- small batch (single grid step) ---
    B = 8
    x = jax.random.normal(kx, (B, obs_dim), jnp.float32)
    a = jax.random.normal(ka, (B, act_dim), jnp.float32)
    out = jax.block_until_ready(adapter_critic_contextualize(x, a, packed))
    ref = _reference(x, a, params, context_dim)
    assert out.shape == (B, 1)
    assert jnp.allclose(out, ref, atol=1e-4, rtol=1e-4), "mismatch vs JAX reference (B=8)"

    # --- larger batch exercising the batch grid + padding (3 tiles of 128) ---
    B2 = 300
    x2 = jax.random.normal(kx2, (B2, obs_dim), jnp.float32)
    a2 = jax.random.normal(ka2, (B2, act_dim), jnp.float32)
    out2 = jax.block_until_ready(
        adapter_critic_contextualize(x2, a2, packed, block_b=128))
    ref2 = _reference(x2, a2, params, context_dim)
    assert out2.shape == (B2, 1)
    assert jnp.allclose(out2, ref2, atol=1e-4, rtol=1e-4), "mismatch vs JAX reference (B=300)"

    print("KERNEL_OK")
</pallas_src>

<mosaic_0001>
module attributes {stable_mosaic.version = 11 : i64} {
  func.func @_adapter_critic_kernel(%arg0: i32, %arg1: memref<8x12xf32, #tpu.memory_space<vmem>>, %arg2: memref<8x4xf32, #tpu.memory_space<vmem>>, %arg3: memref<12x64xf32, #tpu.memory_space<vmem>>, %arg4: memref<4x64xf32, #tpu.memory_space<vmem>>, %arg5: memref<1x64xf32, #tpu.memory_space<vmem>>, %arg6: memref<64x64xf32, #tpu.memory_space<vmem>>, %arg7: memref<1x64xf32, #tpu.memory_space<vmem>>, %arg8: memref<1x32xf32, #tpu.memory_space<vmem>>, %arg9: memref<1x1xf32, #tpu.memory_space<vmem>>, %arg10: memref<8x1xf32, #tpu.memory_space<vmem>>) attributes {dimension_semantics = [#tpu.dimension_semantics<parallel>], iteration_bounds = array<i64: 1>, scalar_prefetch = 0 : i64, scratch_operands = 0 : i64, tpu.core_type = #tpu.core_type<tc>, window_params = [{transform_indices = @transform_0, window_bounds = array<i64: 8, 12>}, {transform_indices = @transform_1, window_bounds = array<i64: 8, 4>}, {pipeline_mode = #tpu.pipeline_mode<synchronous>, transform_indices = @transform_2, window_bounds = array<i64: 12, 64>}, {pipeline_mode = #tpu.pipeline_mode<synchronous>, transform_indices = @transform_3, window_bounds = array<i64: 4, 64>}, {pipeline_mode = #tpu.pipeline_mode<synchronous>, transform_indices = @transform_4, window_bounds = array<i64: 1, 64>}, {pipeline_mode = #tpu.pipeline_mode<synchronous>, transform_indices = @transform_5, window_bounds = array<i64: 64, 64>}, {pipeline_mode = #tpu.pipeline_mode<synchronous>, transform_indices = @transform_6, window_bounds = array<i64: 1, 64>}, {pipeline_mode = #tpu.pipeline_mode<synchronous>, transform_indices = @transform_7, window_bounds = array<i64: 1, 32>}, {pipeline_mode = #tpu.pipeline_mode<synchronous>, transform_indices = @transform_8, window_bounds = array<i64: 1, 1>}, {transform_indices = @transform_9, window_bounds = array<i64: 8, 1>}]} {
    %c0 = arith.constant 0 : index
    %c0_0 = arith.constant 0 : index
    %0 = vector.load %arg1[%c0, %c0_0] : memref<8x12xf32, #tpu.memory_space<vmem>>, vector<8x12xf32>
    %c0_1 = arith.constant 0 : index
    %c0_2 = arith.constant 0 : index
    %1 = vector.load %arg3[%c0_1, %c0_2] : memref<12x64xf32, #tpu.memory_space<vmem>>, vector<12x64xf32>
    %cst = arith.constant dense<0.000000e+00> : vector<8x64xf32>
    %2 = tpu.matmul %0, %1, %cst {dimension_numbers = #tpu.dot_dimension_numbers<[1], [0], [0], [1], [0, 0, 1, 1], [], []>, precision = #tpu.contract_precision<fp32>} : vector<8x12xf32>, vector<12x64xf32>, vector<8x64xf32> -> vector<8x64xf32>
    %c0_3 = arith.constant 0 : index
    %c0_4 = arith.constant 0 : index
    %3 = vector.load %arg2[%c0_3, %c0_4] : memref<8x4xf32, #tpu.memory_space<vmem>>, vector<8x4xf32>
    %c0_5 = arith.constant 0 : index
    %c0_6 = arith.constant 0 : index
    %4 = vector.load %arg4[%c0_5, %c0_6] : memref<4x64xf32, #tpu.memory_space<vmem>>, vector<4x64xf32>
    %cst_7 = arith.constant dense<0.000000e+00> : vector<8x64xf32>
    %5 = tpu.matmul %3, %4, %cst_7 {dimension_numbers = #tpu.dot_dimension_numbers<[1], [0], [0], [1], [0, 0, 1, 1], [], []>, precision = #tpu.contract_precision<fp32>} : vector<8x4xf32>, vector<4x64xf32>, vector<8x64xf32> -> vector<8x64xf32>
    %6 = arith.addf %2, %5 : vector<8x64xf32>
    %c0_8 = arith.constant 0 : index
    %c0_9 = arith.constant 0 : index
    %7 = vector.load %arg5[%c0_8, %c0_9] : memref<1x64xf32, #tpu.memory_space<vmem>>, vector<1x64xf32>
    %8 = vector.broadcast %7 : vector<1x64xf32> to vector<8x64xf32>
    %9 = arith.addf %6, %8 : vector<8x64xf32>
    %cst_10 = arith.constant 0.000000e+00 : f32
    %10 = vector.broadcast %cst_10 : f32 to vector<8x64xf32>
    %11 = arith.maximumf %9, %10 : vector<8x64xf32>
    %c0_11 = arith.constant 0 : index
    %c0_12 = arith.constant 0 : index
    %12 = vector.load %arg6[%c0_11, %c0_12] : memref<64x64xf32, #tpu.memory_space<vmem>>, vector<64x64xf32>
    %cst_13 = arith.constant dense<0.000000e+00> : vector<8x64xf32>
    %13 = tpu.matmul %11, %12, %cst_13 {dimension_numbers = #tpu.dot_dimension_numbers<[1], [0], [0], [1], [0, 0, 1, 1], [], []>, precision = #tpu.contract_precision<fp32>} : vector<8x64xf32>, vector<64x64xf32>, vector<8x64xf32> -> vector<8x64xf32>
    %c0_14 = arith.constant 0 : index
    %c0_15 = arith.constant 0 : index
    %14 = vector.load %arg7[%c0_14, %c0_15] : memref<1x64xf32, #tpu.memory_space<vmem>>, vector<1x64xf32>
    %15 = vector.broadcast %14 : vector<1x64xf32> to vector<8x64xf32>
    %16 = arith.addf %13, %15 : vector<8x64xf32>
    %cst_16 = arith.constant 0.000000e+00 : f32
    %17 = vector.broadcast %cst_16 : f32 to vector<8x64xf32>
    %18 = arith.maximumf %16, %17 : vector<8x64xf32>
    %19 = vector.extract_strided_slice %18 {offsets = [0, 0], sizes = [8, 32], strides = [1, 1]} : vector<8x64xf32> to vector<8x32xf32>
    %20 = vector.extract_strided_slice %18 {offsets = [0, 32], sizes = [8, 32], strides = [1, 1]} : vector<8x64xf32> to vector<8x32xf32>
    %21 = arith.mulf %19, %20 : vector<8x32xf32>
    %c0_17 = arith.constant 0 : index
    %c0_18 = arith.constant 0 : index
    %22 = vector.load %arg8[%c0_17, %c0_18] : memref<1x32xf32, #tpu.memory_space<vmem>>, vector<1x32xf32>
    %23 = vector.broadcast %22 : vector<1x32xf32> to vector<8x32xf32>
    %24 = arith.mulf %21, %23 : vector<8x32xf32>
    %cst_19 = arith.constant dense<0.000000e+00> : vector<8xf32>
    %25 = vector.multi_reduction <add>, %24, %cst_19 [1] : vector<8x32xf32> to vector<8xf32>
    %26 = vector.shape_cast %25 : vector<8xf32> to vector<8x1xf32>
    %c0_20 = arith.constant 0 : index
    %c0_21 = arith.constant 0 : index
    %27 = vector.load %arg9[%c0_20, %c0_21] : memref<1x1xf32, #tpu.memory_space<vmem>>, vector<1x1xf32>
    %28 = vector.broadcast %27 : vector<1x1xf32> to vector<8x1xf32>
    %29 = arith.addf %26, %28 : vector<8x1xf32>
    %c0_22 = arith.constant 0 : index
    %c0_23 = arith.constant 0 : index
    %30 = vector.load %arg10[%c0_22, %c0_23] : memref<8x1xf32, #tpu.memory_space<vmem>>, vector<8x1xf32>
    tpu.vector_store %arg10[%c0_22, %c0_23], %29 {strides = array<i32>} : memref<8x1xf32, #tpu.memory_space<vmem>>, vector<8x1xf32>,
    return
  }
  func.func @transform_0(%arg0: i32) -> (i32, i32) {
    %c0_i32 = arith.constant 0 : i32
    %c0_i32_0 = arith.constant 0 : i32
    return %arg0, %c0_i32 : i32, i32
  }
  func.func @transform_1(%arg0: i32) -> (i32, i32) {
    %c0_i32 = arith.constant 0 : i32
    %c0_i32_0 = arith.constant 0 : i32
    return %arg0, %c0_i32 : i32, i32
  }
  func.func @transform_2(%arg0: i32) -> (i32, i32) {
    %c0_i32 = arith.constant 0 : i32
    %c0_i32_0 = arith.constant 0 : i32
    %c0_i32_1 = arith.constant 0 : i32
    return %c0_i32, %c0_i32_0 : i32, i32
  }
  func.func @transform_3(%arg0: i32) -> (i32, i32) {
    %c0_i32 = arith.constant 0 : i32
    %c0_i32_0 = arith.constant 0 : i32
    %c0_i32_1 = arith.constant 0 : i32
    return %c0_i32, %c0_i32_0 : i32, i32
  }
  func.func @transform_4(%arg0: i32) -> (i32, i32) {
    %c0_i32 = arith.constant 0 : i32
    %c0_i32_0 = arith.constant 0 : i32
    %c0_i32_1 = arith.constant 0 : i32
    return %c0_i32, %c0_i32_0 : i32, i32
  }
  func.func @transform_5(%arg0: i32) -> (i32, i32) {
    %c0_i32 = arith.constant 0 : i32
    %c0_i32_0 = arith.constant 0 : i32
    %c0_i32_1 = arith.constant 0 : i32
    return %c0_i32, %c0_i32_0 : i32, i32
  }
  func.func @transform_6(%arg0: i32) -> (i32, i32) {
    %c0_i32 = arith.constant 0 : i32
    %c0_i32_0 = arith.constant 0 : i32
    %c0_i32_1 = arith.constant 0 : i32
    return %c0_i32, %c0_i32_0 : i32, i32
  }
  func.func @transform_7(%arg0: i32) -> (i32, i32) {
    %c0_i32 = arith.constant 0 : i32
    %c0_i32_0 = arith.constant 0 : i32
    %c0_i32_1 = arith.constant 0 : i32
    return %c0_i32, %c0_i32_0 : i32, i32
  }
  func.func @transform_8(%arg0: i32) -> (i32, i32) {
    %c0_i32 = arith.constant 0 : i32
    %c0_i32_0 = arith.constant 0 : i32
    %c0_i32_1 = arith.constant 0 : i32
    return %c0_i32, %c0_i32_0 : i32, i32
  }
  func.func @transform_9(%arg0: i32) -> (i32, i32) {
    %c0_i32 = arith.constant 0 : i32
    %c0_i32_0 = arith.constant 0 : i32
    return %arg0, %c0_i32 : i32, i32
  }
}

</mosaic_0001>

<llo_original>
// kernel: tpu_custom_call.1
$region0: #{tpu_custom_call.1}
  #allocation0 [shape = 'u32[]', space=smem, size = 0x4, offset = 0x4, fixed_abs, tag = 'smem constant byte address 0x4 - core index']
  #allocation1 [shape = 'u32[144,128]{1,0:T(1,128)}', space=vmem, size = 0x12000, scoped, tag = 'internal scratch']
  #allocation2 [shape = 'f32[1,1]{1,0:T(1,128)S(1)}', space=vmem, size = 0x200, scoped, tag = 'scoped memory for tpu_custom_call.1']
  %s0 = inlined_call_operand.hbm [shape: f32[8,12], index: 0, kind: input, shape index: {}]
  %s1 = inlined_call_operand.vmem [shape: f32[8,4], index: 1, kind: input, shape index: {}]
  %s2 = inlined_call_operand.vmem [shape: f32[12,64], index: 2, kind: input, shape index: {}]
  %s3 = inlined_call_operand.vmem [shape: f32[4,64], index: 3, kind: input, shape index: {}]
  %s4 = inlined_call_operand.vmem [shape: f32[1,64], index: 4, kind: input, shape index: {}]
  %s5 = inlined_call_operand.hbm [shape: f32[64,64], index: 5, kind: input, shape index: {}]
  %s6 = inlined_call_operand.vmem [shape: f32[1,64], index: 6, kind: input, shape index: {}]
  %s7 = inlined_call_operand.vmem [shape: f32[1,32], index: 7, kind: input, shape index: {}]
  %s8 = inlined_call_operand.<no memory space> [shape: f32[1,1], index: 8, kind: input, shape index: {}]
  %s9 = inlined_call_operand.vmem [shape: f32[8,1], index: 9, kind: output, shape index: {}]
  %s10 = sld [smem:[#allocation0]]
  $region54: #{tpu_custom_call.1} parent=0
    _
  %s12 = ssub.s32 1, %s10
  %s13 = scalar_select 0, %s12, %s10
  %v14 = vstv %s8
  %15 = vst [vmem:[#allocation2] sm:$0x1] %v14
  $region1: #{tpu_custom_call.1} parent=0
    #allocation3 [shape = 'u8[4096]{0}', space=vmem, size = 0x1000, scoped, tag = 'input window, operand 0, single buffered']
    #allocation4 [shape = 's32[1]{0}', space=sflag, size = 0x4, scoped, tag = 'scoped memory for tpu_custom_call.1']
    #allocation5 [shape = 'u8[32768]{0}', space=vmem, size = 0x8000, scoped, tag = 'input window, operand 5, single buffered']
    #allocation6 [shape = 's32[1]{0}', space=sflag, size = 0x4, scoped, tag = 'scoped memory for tpu_custom_call.1']
    %16 = vsyncpa [#allocation4], 0
    %17 = vsyncpa [#allocation6], 0
    // Predicated region
    $region2: #{tpu_custom_call.1} parent=1 // pred_check
      _
    $region3: #{tpu_custom_call.1} parent=1 // pred_check_branch
      %19 = sbr.rel (0) target = $region5
    $region4: #{tpu_custom_call.1} parent=1 // pred_region
      %s21 = ssub.s32 128, 128
      %22 = vsyncadd [#allocation4], %s21
      %s24 = sshll.u32 [#allocation3], 4
      %s25 = int_to_ptr.vmem [resolvable:$true] %s24
      %27 = dma.hbm_to_vmem [thread:$0]  %s0, 128, %s25, [#allocation4]
    $region5: #{tpu_custom_call.1} parent=1 // pred_fallthru
      _
    // Predicated region
    $region6: #{tpu_custom_call.1} parent=1 // pred_check
      _
    $region7: #{tpu_custom_call.1} parent=1 // pred_check_branch
      %29 = sbr.rel (0) target = $region9
    $region8: #{tpu_custom_call.1} parent=1 // pred_region
      _
    $region9: #{tpu_custom_call.1} parent=1 // pred_fallthru
      _
    // Predicated region
    $region10: #{tpu_custom_call.1} parent=1 // pred_check
      _
    $region11: #{tpu_custom_call.1} parent=1 // pred_check_branch
      %31 = sbr.rel (0) target = $region13
    $region12: #{tpu_custom_call.1} parent=1 // pred_region
      _
    $region13: #{tpu_custom_call.1} parent=1 // pred_fallthru
      _
    // Predicated region
    $region14: #{tpu_custom_call.1} parent=1 // pred_check
      _
    $region15: #{tpu_custom_call.1} parent=1 // pred_check_branch
      %33 = sbr.rel (0) target = $region17
    $region16: #{tpu_custom_call.1} parent=1 // pred_region
      _
    $region17: #{tpu_custom_call.1} parent=1 // pred_fallthru
      _
    // Predicated region
    $region18: #{tpu_custom_call.1} parent=1 // pred_check
      _
    $region19: #{tpu_custom_call.1} parent=1 // pred_check_branch
      %35 = sbr.rel (0) target = $region21
    $region20: #{tpu_custom_call.1} parent=1 // pred_region
      _
    $region21: #{tpu_custom_call.1} parent=1 // pred_fallthru
      _
    // Predicated region
    $region22: #{tpu_custom_call.1} parent=1 // pred_check
      _
    $region23: #{tpu_custom_call.1} parent=1 // pred_check_branch
      %37 = sbr.rel (0) target = $region25
    $region24: #{tpu_custom_call.1} parent=1 // pred_region
      %s39 = ssub.s32 1024, 1024
      %40 = vsyncadd [#allocation6], %s39
      %s41 = sshll.u32 [#allocation5], 4
      %s42 = int_to_ptr.vmem [resolvable:$true] %s41
      %47 = dma.hbm_to_vmem [thread:$0]  %s5, 1024, %s42, [#allocation6], 128, 128, 8
    $region25: #{tpu_custom_call.1} parent=1 // pred_fallthru
      _
    // Predicated region
    $region26: #{tpu_custom_call.1} parent=1 // pred_check
      _
    $region27: #{tpu_custom_call.1} parent=1 // pred_check_branch
      %49 = sbr.rel (0) target = $region29
    $region28: #{tpu_custom_call.1} parent=1 // pred_region
      _
    $region29: #{tpu_custom_call.1} parent=1 // pred_fallthru
      _
    // Predicated region
    $region30: #{tpu_custom_call.1} parent=1 // pred_check
      _
    $region31: #{tpu_custom_call.1} parent=1 // pred_check_branch
      %51 = sbr.rel (0) target = $region33
    $region32: #{tpu_custom_call.1} parent=1 // pred_region
      _
    $region33: #{tpu_custom_call.1} parent=1 // pred_fallthru
      _
    // Predicated region
    $region34: #{tpu_custom_call.1} parent=1 // pred_check
      _
    $region35: #{tpu_custom_call.1} parent=1 // pred_check_branch
      %53 = sbr.rel (0) target = $region37
    $region36: #{tpu_custom_call.1} parent=1 // pred_region
      _
    $region37: #{tpu_custom_call.1} parent=1 // pred_fallthru
      _
    // Predicated region
    $region38: #{tpu_custom_call.1} parent=1 // pred_check
      _
    $region39: #{tpu_custom_call.1} parent=1 // pred_check_branch
      %55 = sbr.rel (0) target = $region41
    $region40: #{tpu_custom_call.1} parent=1 // pred_region
      %56 = dma.done [#allocation4], 128
    $region41: #{tpu_custom_call.1} parent=1 // pred_fallthru
      _
    // Predicated region
    $region42: #{tpu_custom_call.1} parent=1 // pred_check
      _
    $region43: #{tpu_custom_call.1} parent=1 // pred_check_branch
      %58 = sbr.rel (0) target = $region45
    $region44: #{tpu_custom_call.1} parent=1 // pred_region
      %59 = dma.done [#allocation6], 1024
    $region45: #{tpu_custom_call.1} parent=1 // pred_fallthru
      _
    %v60 = vld [vmem:[#allocation3] sm:$0xff]
    %v61 = vld [vmem:[%s2] sm:$0xff]
    %v62 = vld [vmem:[%s2 + $0x8] sm:$0xf]
    %v63 = vld [vmem:[%s1] sm:$0xff]
    %v64 = vld [vmem:[%s3] sm:$0xf]
    %vm65 = vcmask 31744
    %v67 = vsel %vm65, %v63, 0
    %vm69 = vcmask 1043456
    %v71 = vsel %vm69, %v64, 0
    %73 = vmatprep.subr.mxu0 0.0
    %v74 = vand.u32 %v71, 4294901760
    %75 = vmatpush1.msra.mxu0 %v74
    %76 = vmatprep.subr.mxu0 0.0
    %77 = vmatpush1.msra.mxu0 0.0
    %78 = vmatprep.subr.mxu0 0.0
    %79 = vmatpush1.msra.mxu0 0.0
    %80 = vmatprep.subr.mxu0 0.0
    %81 = vmatpush1.msra.mxu0 0.0
    %82 = vmatprep.subr.mxu0 0.0
    %83 = vmatpush1.msra.mxu0 0.0
    %84 = vmatprep.subr.mxu0 0.0
    %85 = vmatpush1.msra.mxu0 0.0
    %86 = vmatprep.subr.mxu0 0.0
    %87 = vmatpush1.msra.mxu0 0.0
    %88 = vmatprep.subr.mxu0 0.0
    %89 = vmatpush1.msra.mxu0 0.0
    %90 = vmatprep.subr.mxu0 0.0
    %91 = vmatpush1.msra.mxu0 0.0
    %92 = vmatprep.subr.mxu0 0.0
    %93 = vmatpush1.msra.mxu0 0.0
    %94 = vmatprep.subr.mxu0 0.0
    %95 = vmatpush1.msra.mxu0 0.0
    %96 = vmatprep.subr.mxu0 0.0
    %97 = vmatpush1.msra.mxu0 0.0
    %98 = vmatprep.subr.mxu0 0.0
    %99 = vmatpush1.msra.mxu0 0.0
    %100 = vmatprep.subr.mxu0 0.0
    %101 = vmatpush1.msra.mxu0 0.0
    %102 = vmatprep.subr.mxu0 0.0
    %103 = vmatpush1.msra.mxu0 0.0
    %104 = vmatprep.subr.mxu0 0.0
    %105 = vmatpush1.msra.mxu0 0.0
    %106 = vmatprep.subr.mxu0 0.0
    %107 = vmatpush1.msra.mxu0 0.0
    %108 = vmatprep.subr.mxu0 0.0
    %109 = vmatpush1.msra.mxu0 0.0
    %110 = vmatprep.subr.mxu0 0.0
    %111 = vmatpush1.msra.mxu0 0.0
    %112 = vmatprep.subr.mxu0 0.0
    %113 = vmatpush1.msra.mxu0 0.0
    %114 = vmatprep.subr.mxu0 0.0
    %115 = vmatpush1.msra.mxu0 0.0
    %116 = vmatprep.subr.mxu0 0.0
    %117 = vmatpush1.msra.mxu0 0.0
    %118 = vmatprep.subr.mxu0 0.0
    %119 = vmatpush1.msra.mxu0 0.0
    %120 = vmatprep.subr.mxu0 0.0
    %121 = vmatpush1.msra.mxu0 0.0
    %122 = vmatprep.subr.mxu0 0.0
    %123 = vmatpush1.msra.mxu0 0.0
    %124 = vmatprep.subr.mxu0 0.0
    %125 = vmatpush1.msra.mxu0 0.0
    %126 = vmatprep.subr.mxu0 0.0
    %127 = vmatpush1.msra.mxu0 0.0
    %128 = vmatprep.subr.mxu0 0.0
    %129 = vmatpush1.msra.mxu0 0.0
    %130 = vmatprep.subr.mxu0 0.0
    %131 = vmatpush1.msra.mxu0 0.0
    %132 = vmatprep.subr.mxu0 0.0
    %133 = vmatpush1.msra.mxu0 0.0
    %134 = vmatprep.subr.mxu0 0.0
    %135 = vmatpush1.msra.mxu0 0.0
    %136 = vmatprep.subr.mxu0 0.0
    %137 = vmatpush1.msra.mxu0 0.0
    %138 = vmatprep.mubr.f32.mxu0 0.0
    %v139 = vand.u32 %v67, 4294901760
    %v140 = vsub.f32 %v67, %v139
    %v141 = vand.u32 %v140, 4294901760
    %v142 = vsub.f32 %v140, %v141
    %v143 = vand.u32 %v142, 4294901760
    %144 = vmatmul.mubr.f32.gmra.mrb[0].mxu0 %v143
    %v145 = vpop.f32.mrb[0].mxu0
    %v146 = vadd.f32 0.0, %v145
    %v147 = vpop.f32.mrb[0].mxu0
    %148 = vdwg.mxu0
    %149 = vmatprep.subr.mxu0 0.0
    %v150 = vand.u32 %v71, 4294901760
    %v151 = vsub.f32 %v71, %v150
    %v152 = vand.u32 %v151, 4294901760
    %v153 = vsub.f32 %v151, %v152
    %v154 = vand.u32 %v153, 4294901760
    %155 = vmatpush1.msra.mxu0 %v154
    %156 = vmatprep.subr.mxu0 0.0
    %157 = vmatpush1.msra.mxu0 0.0
    %158 = vmatprep.subr.mxu0 0.0
    %159 = vmatpush1.msra.mxu0 0.0
    %160 = vmatprep.subr.mxu0 0.0
    %161 = vmatpush1.msra.mxu0 0.0
    %162 = vmatprep.subr.mxu0 0.0
    %163 = vmatpush1.msra.mxu0 0.0
    %164 = vmatprep.subr.mxu0 0.0
    %165 = vmatpush1.msra.mxu0 0.0
    %166 = vmatprep.subr.mxu0 0.0
    %167 = vmatpush1.msra.mxu0 0.0
    %168 = vmatprep.subr.mxu0 0.0
    %169 = vmatpush1.msra.mxu0 0.0
    %170 = vmatprep.subr.mxu0 0.0
    %171 = vmatpush1.msra.mxu0 0.0
    %172 = vmatprep.subr.mxu0 0.0
    %173 = vmatpush1.msra.mxu0 0.0
    %174 = vmatprep.subr.mxu0 0.0
    %175 = vmatpush1.msra.mxu0 0.0
    %176 = vmatprep.subr.mxu0 0.0
    %177 = vmatpush1.msra.mxu0 0.0
    %178 = vmatprep.subr.mxu0 0.0
    %179 = vmatpush1.msra.mxu0 0.0
    %180 = vmatprep.subr.mxu0 0.0
    %181 = vmatpush1.msra.mxu0 0.0
    %182 = vmatprep.subr.mxu0 0.0
    %183 = vmatpush1.msra.mxu0 0.0
    %184 = vmatprep.subr.mxu0 0.0
    %185 = vmatpush1.msra.mxu0 0.0
    %186 = vmatprep.subr.mxu0 0.0
    %187 = vmatpush1.msra.mxu0 0.0
    %188 = vmatprep.subr.mxu0 0.0
    %189 = vmatpush1.msra.mxu0 0.0
    %190 = vmatprep.subr.mxu0 0.0
    %191 = vmatpush1.msra.mxu0 0.0
    %192 = vmatprep.subr.mxu0 0.0
    %193 = vmatpush1.msra.mxu0 0.0
    %194 = vmatprep.subr.mxu0 0.0
    %195 = vmatpush1.msra.mxu0 0.0
    %196 = vmatprep.subr.mxu0 0.0
    %197 = vmatpush1.msra.mxu0 0.0
    %198 = vmatprep.subr.mxu0 0.0
    %199 = vmatpush1.msra.mxu0 0.0
    %200 = vmatprep.subr.mxu0 0.0
    %201 = vmatpush1.msra.mxu0 0.0
    %202 = vmatprep.subr.mxu0 0.0
    %203 = vmatpush1.msra.mxu0 0.0
    %204 = vmatprep.subr.mxu0 0.0
    %205 = vmatpush1.msra.mxu0 0.0
    %206 = vmatprep.subr.mxu0 0.0
    %207 = vmatpush1.msra.mxu0 0.0
    %208 = vmatprep.subr.mxu0 0.0
    %209 = vmatpush1.msra.mxu0 0.0
    %210 = vmatprep.subr.mxu0 0.0
    %211 = vmatpush1.msra.mxu0 0.0
    %212 = vmatprep.subr.mxu0 0.0
    %213 = vmatpush1.msra.mxu0 0.0
    %214 = vmatprep.subr.mxu0 0.0
    %215 = vmatpush1.msra.mxu0 0.0
    %216 = vmatprep.subr.mxu0 0.0
    %217 = vmatpush1.msra.mxu0 0.0
    %218 = vmatprep.mubr.f32.mxu0 0.0
    %v219 = vand.u32 %v67, 4294901760
    %220 = vmatmul.mubr.f32.gmra.mrb[0].mxu0 %v219
    %v221 = vpop.f32.mrb[0].mxu0
    %v222 = vadd.f32 %v146, %v221
    %v223 = vpop.f32.mrb[0].mxu0
    %224 = vdwg.mxu0
    %225 = vmatprep.subr.mxu0 0.0
    %v226 = vand.u32 %v71, 4294901760
    %v227 = vsub.f32 %v71, %v226
    %228 = vmatpush1.msra.mxu0 %v227
    %229 = vmatprep.subr.mxu0 0.0
    %230 = vmatpush1.msra.mxu0 0.0
    %231 = vmatprep.subr.mxu0 0.0
    %232 = vmatpush1.msra.mxu0 0.0
    %233 = vmatprep.subr.mxu0 0.0
    %234 = vmatpush1.msra.mxu0 0.0
    %235 = vmatprep.subr.mxu0 0.0
    %236 = vmatpush1.msra.mxu0 0.0
    %237 = vmatprep.subr.mxu0 0.0
    %238 = vmatpush1.msra.mxu0 0.0
    %239 = vmatprep.subr.mxu0 0.0
    %240 = vmatpush1.msra.mxu0 0.0
    %241 = vmatprep.subr.mxu0 0.0
    %242 = vmatpush1.msra.mxu0 0.0
    %243 = vmatprep.subr.mxu0 0.0
    %244 = vmatpush1.msra.mxu0 0.0
    %245 = vmatprep.subr.mxu0 0.0
    %246 = vmatpush1.msra.mxu0 0.0
    %247 = vmatprep.subr.mxu0 0.0
    %248 = vmatpush1.msra.mxu0 0.0
    %249 = vmatprep.subr.mxu0 0.0
    %250 = vmatpush1.msra.mxu0 0.0
    %251 = vmatprep.subr.mxu0 0.0
    %252 = vmatpush1.msra.mxu0 0.0
    %253 = vmatprep.subr.mxu0 0.0
    %254 = vmatpush1.msra.mxu0 0.0
    %255 = vmatprep.subr.mxu0 0.0
    %256 = vmatpush1.msra.mxu0 0.0
    %257 = vmatprep.subr.mxu0 0.0
    %258 = vmatpush1.msra.mxu0 0.0
    %259 = vmatprep.subr.mxu0 0.0
    %260 = vmatpush1.msra.mxu0 0.0
    %261 = vmatprep.subr.mxu0 0.0
    %262 = vmatpush1.msra.mxu0 0.0
    %263 = vmatprep.subr.mxu0 0.0
    %264 = vmatpush1.msra.mxu0 0.0
    %265 = vmatprep.subr.mxu0 0.0
    %266 = vmatpush1.msra.mxu0 0.0
    %267 = vmatprep.subr.mxu0 0.0
    %268 = vmatpush1.msra.mxu0 0.0
    %269 = vmatprep.subr.mxu0 0.0
    %270 = vmatpush1.msra.mxu0 0.0
    %271 = vmatprep.subr.mxu0 0.0
    %272 = vmatpush1.msra.mxu0 0.0
    %273 = vmatprep.subr.mxu0 0.0
    %274 = vmatpush1.msra.mxu0 0.0
    %275 = vmatprep.subr.mxu0 0.0
    %276 = vmatpush1.msra.mxu0 0.0
    %277 = vmatprep.subr.mxu0 0.0
    %278 = vmatpush1.msra.mxu0 0.0
    %279 = vmatprep.subr.mxu0 0.0
    %280 = vmatpush1.msra.mxu0 0.0
    %281 = vmatprep.subr.mxu0 0.0
    %282 = vmatpush1.msra.mxu0 0.0
    %283 = vmatprep.subr.mxu0 0.0
    %284 = vmatpush1.msra.mxu0 0.0
    %285 = vmatprep.subr.mxu0 0.0
    %286 = vmatpush1.msra.mxu0 0.0
    %287 = vmatprep.subr.mxu0 0.0
    %288 = vmatpush1.msra.mxu0 0.0
    %289 = vmatprep.subr.mxu0 0.0
    %290 = vmatpush1.msra.mxu0 0.0
    %291 = vmatprep.mubr.f32.mxu0 0.0
    %v292 = vand.u32 %v67, 4294901760
    %v293 = vsub.f32 %v67, %v292
    %294 = vmatmul.mubr.f32.gmra.mrb[0].mxu0 %v293
    %v295 = vpop.f32.mrb[0].mxu0
    %v296 = vadd.f32 %v222, %v295
    %v297 = vpop.f32.mrb[0].mxu0
    %298 = vdwg.mxu0
    %299 = vmatprep.subr.mxu0 0.0
    %v300 = vand.u32 %v71, 4294901760
    %301 = vmatpush1.msra.mxu0 %v300
    %302 = vmatprep.subr.mxu0 0.0
    %303 = vmatpush1.msra.mxu0 0.0
    %304 = vmatprep.subr.mxu0 0.0
    %305 = vmatpush1.msra.mxu0 0.0
    %306 = vmatprep.subr.mxu0 0.0
    %307 = vmatpush1.msra.mxu0 0.0
    %308 = vmatprep.subr.mxu0 0.0
    %309 = vmatpush1.msra.mxu0 0.0
    %310 = vmatprep.subr.mxu0 0.0
    %311 = vmatpush1.msra.mxu0 0.0
    %312 = vmatprep.subr.mxu0 0.0
    %313 = vmatpush1.msra.mxu0 0.0
    %314 = vmatprep.subr.mxu0 0.0
    %315 = vmatpush1.msra.mxu0 0.0
    %316 = vmatprep.subr.mxu0 0.0
    %317 = vmatpush1.msra.mxu0 0.0
    %318 = vmatprep.subr.mxu0 0.0
    %319 = vmatpush1.msra.mxu0 0.0
    %320 = vmatprep.subr.mxu0 0.0
    %321 = vmatpush1.msra.mxu0 0.0
    %322 = vmatprep.subr.mxu0 0.0
    %323 = vmatpush1.msra.mxu0 0.0
    %324 = vmatprep.subr.mxu0 0.0
    %325 = vmatpush1.msra.mxu0 0.0
    %326 = vmatprep.subr.mxu0 0.0
    %327 = vmatpush1.msra.mxu0 0.0
    %328 = vmatprep.subr.mxu0 0.0
    %329 = vmatpush1.msra.mxu0 0.0
    %330 = vmatprep.subr.mxu0 0.0
    %331 = vmatpush1.msra.mxu0 0.0
    %332 = vmatprep.subr.mxu0 0.0
    %333 = vmatpush1.msra.mxu0 0.0
    %334 = vmatprep.subr.mxu0 0.0
    %335 = vmatpush1.msra.mxu0 0.0
    %336 = vmatprep.subr.mxu0 0.0
    %337 = vmatpush1.msra.mxu0 0.0
    %338 = vmatprep.subr.mxu0 0.0
    %339 = vmatpush1.msra.mxu0 0.0
    %340 = vmatprep.subr.mxu0 0.0
    %341 = vmatpush1.msra.mxu0 0.0
    %342 = vmatprep.subr.mxu0 0.0
    %343 = vmatpush1.msra.mxu0 0.0
    %344 = vmatprep.subr.mxu0 0.0
    %345 = vmatpush1.msra.mxu0 0.0
    %346 = vmatprep.subr.mxu0 0.0
    %347 = vmatpush1.msra.mxu0 0.0
    %348 = vmatprep.subr.mxu0 0.0
    %349 = vmatpush1.msra.mxu0 0.0
    %350 = vmatprep.subr.mxu0 0.0
    %351 = vmatpush1.msra.mxu0 0.0
    %352 = vmatprep.subr.mxu0 0.0
    %353 = vmatpush1.msra.mxu0 0.0
    %354 = vmatprep.subr.mxu0 0.0
    %355 = vmatpush1.msra.mxu0 0.0
    %356 = vmatprep.subr.mxu0 0.0
    %357 = vmatpush1.msra.mxu0 0.0
    %358 = vmatprep.subr.mxu0 0.0
    %359 = vmatpush1.msra.mxu0 0.0
    %360 = vmatprep.subr.mxu0 0.0
    %361 = vmatpush1.msra.mxu0 0.0
    %362 = vmatprep.subr.mxu0 0.0
    %363 = vmatpush1.msra.mxu0 0.0
    %364 = vmatprep.mubr.f32.mxu0 0.0
    %v365 = vand.u32 %v67, 4294901760
    %v366 = vsub.f32 %v67, %v365
    %v367 = vand.u32 %v366, 4294901760
    %368 = vmatmul.mubr.f32.gmra.mrb[0].mxu0 %v367
    %v369 = vpop.f32.mrb[0].mxu0
    %v370 = vadd.f32 %v296, %v369
    %v371 = vpop.f32.mrb[0].mxu0
    %372 = vdwg.mxu0
    %373 = vmatprep.subr.mxu0 0.0
    %v374 = vand.u32 %v71, 4294901760
    %v375 = vsub.f32 %v71, %v374
    %v376 = vand.u32 %v375, 4294901760
    %377 = vmatpush1.msra.mxu0 %v376
    %378 = vmatprep.subr.mxu0 0.0
    %379 = vmatpush1.msra.mxu0 0.0
    %380 = vmatprep.subr.mxu0 0.0
    %381 = vmatpush1.msra.mxu0 0.0
    %382 = vmatprep.subr.mxu0 0.0
    %383 = vmatpush1.msra.mxu0 0.0
    %384 = vmatprep.subr.mxu0 0.0
    %385 = vmatpush1.msra.mxu0 0.0
    %386 = vmatprep.subr.mxu0 0.0
    %387 = vmatpush1.msra.mxu0 0.0
    %388 = vmatprep.subr.mxu0 0.0
    %389 = vmatpush1.msra.mxu0 0.0
    %390 = vmatprep.subr.mxu0 0.0
    %391 = vmatpush1.msra.mxu0 0.0
    %392 = vmatprep.subr.mxu0 0.0
    %393 = vmatpush1.msra.mxu0 0.0
    %394 = vmatprep.subr.mxu0 0.0
    %395 = vmatpush1.msra.mxu0 0.0
    %396 = vmatprep.subr.mxu0 0.0
    %397 = vmatpush1.msra.mxu0 0.0
    %398 = vmatprep.subr.mxu0 0.0
    %399 = vmatpush1.msra.mxu0 0.0
    %400 = vmatprep.subr.mxu0 0.0
    %401 = vmatpush1.msra.mxu0 0.0
    %402 = vmatprep.subr.mxu0 0.0
    %403 = vmatpush1.msra.mxu0 0.0
    %404 = vmatprep.subr.mxu0 0.0
    %405 = vmatpush1.msra.mxu0 0.0
    %406 = vmatprep.subr.mxu0 0.0
    %407 = vmatpush1.msra.mxu0 0.0
    %408 = vmatprep.subr.mxu0 0.0
    %409 = vmatpush1.msra.mxu0 0.0
    %410 = vmatprep.subr.mxu0 0.0
    %411 = vmatpush1.msra.mxu0 0.0
    %412 = vmatprep.subr.mxu0 0.0
    %413 = vmatpush1.msra.mxu0 0.0
    %414 = vmatprep.subr.mxu0 0.0
    %415 = vmatpush1.msra.mxu0 0.0
    %416 = vmatprep.subr.mxu0 0.0
    %417 = vmatpush1.msra.mxu0 0.0
    %418 = vmatprep.subr.mxu0 0.0
    %419 = vmatpush1.msra.mxu0 0.0
    %420 = vmatprep.subr.mxu0 0.0
    %421 = vmatpush1.msra.mxu0 0.0
    %422 = vmatprep.subr.mxu0 0.0
    %423 = vmatpush1.msra.mxu0 0.0
    %424 = vmatprep.subr.mxu0 0.0
    %425 = vmatpush1.msra.mxu0 0.0
    %426 = vmatprep.subr.mxu0 0.0
    %427 = vmatpush1.msra.mxu0 0.0
    %428 = vmatprep.subr.mxu0 0.0
    %429 = vmatpush1.msra.mxu0 0.0
    %430 = vmatprep.subr.mxu0 0.0
    %431 = vmatpush1.msra.mxu0 0.0
    %432 = vmatprep.subr.mxu0 0.0
    %433 = vmatpush1.msra.mxu0 0.0
    %434 = vmatprep.subr.mxu0 0.0
    %435 = vmatpush1.msra.mxu0 0.0
    %436 = vmatprep.subr.mxu0 0.0
    %437 = vmatpush1.msra.mxu0 0.0
    %438 = vmatprep.subr.mxu0 0.0
    %439 = vmatpush1.msra.mxu0 0.0
    %440 = vmatprep.mubr.f32.mxu0 0.0
    %v441 = vand.u32 %v67, 4294901760
    %442 = vmatmul.mubr.f32.gmra.mrb[0].mxu0 %v441
    %v443 = vpop.f32.mrb[0].mxu0
    %v444 = vadd.f32 %v370, %v443
    %v445 = vpop.f32.mrb[0].mxu0
    %446 = vdwg.mxu0
    %447 = vmatprep.subr.mxu0 0.0
    %v448 = vand.u32 %v71, 4294901760
    %449 = vmatpush1.msra.mxu0 %v448
    %450 = vmatprep.subr.mxu0 0.0
    %451 = vmatpush1.msra.mxu0 0.0
    %452 = vmatprep.subr.mxu0 0.0
    %453 = vmatpush1.msra.mxu0 0.0
    %454 = vmatprep.subr.mxu0 0.0
    %455 = vmatpush1.msra.mxu0 0.0
    %456 = vmatprep.subr.mxu0 0.0
    %457 = vmatpush1.msra.mxu0 0.0
    %458 = vmatprep.subr.mxu0 0.0
    %459 = vmatpush1.msra.mxu0 0.0
    %460 = vmatprep.subr.mxu0 0.0
    %461 = vmatpush1.msra.mxu0 0.0
    %462 = vmatprep.subr.mxu0 0.0
    %463 = vmatpush1.msra.mxu0 0.0
    %464 = vmatprep.subr.mxu0 0.0
    %465 = vmatpush1.msra.mxu0 0.0
    %466 = vmatprep.subr.mxu0 0.0
    %467 = vmatpush1.msra.mxu0 0.0
    %468 = vmatprep.subr.mxu0 0.0
    %469 = vmatpush1.msra.mxu0 0.0
    %470 = vmatprep.subr.mxu0 0.0
    %471 = vmatpush1.msra.mxu0 0.0
    %472 = vmatprep.subr.mxu0 0.0
    %473 = vmatpush1.msra.mxu0 0.0
    %474 = vmatprep.subr.mxu0 0.0
    %475 = vmatpush1.msra.mxu0 0.0
    %476 = vmatprep.subr.mxu0 0.0
    %477 = vmatpush1.msra.mxu0 0.0
    %478 = vmatprep.subr.mxu0 0.0
    %479 = vmatpush1.msra.mxu0 0.0
    %480 = vmatprep.subr.mxu0 0.0
    %481 = vmatpush1.msra.mxu0 0.0
    %482 = vmatprep.subr.mxu0 0.0
    %483 = vmatpush1.msra.mxu0 0.0
    %484 = vmatprep.subr.mxu0 0.0
    %485 = vmatpush1.msra.mxu0 0.0
    %486 = vmatprep.subr.mxu0 0.0
    %487 = vmatpush1.msra.mxu0 0.0
    %488 = vmatprep.subr.mxu0 0.0
    %489 = vmatpush1.msra.mxu0 0.0
    %490 = vmatprep.subr.mxu0 0.0
    %491 = vmatpush1.msra.mxu0 0.0
    %492 = vmatprep.subr.mxu0 0.0
    %493 = vmatpush1.msra.mxu0 0.0
    %494 = vmatprep.subr.mxu0 0.0
    %495 = vmatpush1.msra.mxu0 0.0
    %496 = vmatprep.subr.mxu0 0.0
    %497 = vmatpush1.msra.mxu0 0.0
    %498 = vmatprep.subr.mxu0 0.0
    %499 = vmatpush1.msra.mxu0 0.0
    %500 = vmatprep.subr.mxu0 0.0
    %501 = vmatpush1.msra.mxu0 0.0
    %502 = vmatprep.subr.mxu0 0.0
    %503 = vmatpush1.msra.mxu0 0.0
    %504 = vmatprep.subr.mxu0 0.0
    %505 = vmatpush1.msra.mxu0 0.0
    %506 = vmatprep.subr.mxu0 0.0
    %507 = vmatpush1.msra.mxu0 0.0
    %508 = vmatprep.subr.mxu0 0.0
    %509 = vmatpush1.msra.mxu0 0.0
    %510 = vmatprep.subr.mxu0 0.0
    %511 = vmatpush1.msra.mxu0 0.0
    %512 = vmatprep.mubr.f32.mxu0 0.0
    %v513 = vand.u32 %v67, 4294901760
    %514 = vmatmul.mubr.f32.gmra.mrb[0].mxu0 %v513
    %v515 = vpop.f32.mrb[0].mxu0
    %v516 = vadd.f32 %v444, %v515
    %v517 = vpop.f32.mrb[0].mxu0
    %518 = vdwg.mxu0
    %vm519 = vcmask 97280
    %v521 = vsel %vm519, %v60, 0
    %v524 = vsel %vm69, %v62, 0
    %526 = vmatprep.subr.mxu0 0.0
    %v527 = vand.u32 %v61, 4294901760
    %528 = vmatpush1.msra.mxu0 %v527
    %529 = vmatprep.subr.mxu0 0.0
    %v530 = vand.u32 %v524, 4294901760
    %531 = vmatpush1.msra.mxu0 %v530
    %532 = vmatprep.subr.mxu0 0.0
    %533 = vmatpush1.msra.mxu0 0.0
    %534 = vmatprep.subr.mxu0 0.0
    %535 = vmatpush1.msra.mxu0 0.0
    %536 = vmatprep.subr.mxu0 0.0
    %537 = vmatpush1.msra.mxu0 0.0
    %538 = vmatprep.subr.mxu0 0.0
    %539 = vmatpush1.msra.mxu0 0.0
    %540 = vmatprep.subr.mxu0 0.0
    %541 = vmatpush1.msra.mxu0 0.0
    %542 = vmatprep.subr.mxu0 0.0
    %543 = vmatpush1.msra.mxu0 0.0
    %544 = vmatprep.subr.mxu0 0.0
    %545 = vmatpush1.msra.mxu0 0.0
    %546 = vmatprep.subr.mxu0 0.0
    %547 = vmatpush1.msra.mxu0 0.0
    %548 = vmatprep.subr.mxu0 0.0
    %549 = vmatpush1.msra.mxu0 0.0
    %550 = vmatprep.subr.mxu0 0.0
    %551 = vmatpush1.msra.mxu0 0.0
    %552 = vmatprep.subr.mxu0 0.0
    %553 = vmatpush1.msra.mxu0 0.0
    %554 = vmatprep.subr.mxu0 0.0
    %555 = vmatpush1.msra.mxu0 0.0
    %556 = vmatprep.subr.mxu0 0.0
    %557 = vmatpush1.msra.mxu0 0.0
    %558 = vmatprep.subr.mxu0 0.0
    %559 = vmatpush1.msra.mxu0 0.0
    %560 = vmatprep.subr.mxu0 0.0
    %561 = vmatpush1.msra.mxu0 0.0
    %562 = vmatprep.subr.mxu0 0.0
    %563 = vmatpush1.msra.mxu0 0.0
    %564 = vmatprep.subr.mxu0 0.0
    %565 = vmatpush1.msra.mxu0 0.0
    %566 = vmatprep.subr.mxu0 0.0
    %567 = vmatpush1.msra.mxu0 0.0
    %568 = vmatprep.subr.mxu0 0.0
    %569 = vmatpush1.msra.mxu0 0.0
    %570 = vmatprep.subr.mxu0 0.0
    %571 = vmatpush1.msra.mxu0 0.0
    %572 = vmatprep.subr.mxu0 0.0
    %573 = vmatpush1.msra.mxu0 0.0
    %574 = vmatprep.subr.mxu0 0.0
    %575 = vmatpush1.msra.mxu0 0.0
    %576 = vmatprep.subr.mxu0 0.0
    %577 = vmatpush1.msra.mxu0 0.0
    %578 = vmatprep.subr.mxu0 0.0
    %579 = vmatpush1.msra.mxu0 0.0
    %580 = vmatprep.subr.mxu0 0.0
    %581 = vmatpush1.msra.mxu0 0.0
    %582 = vmatprep.subr.mxu0 0.0
    %583 = vmatpush1.msra.mxu0 0.0
    %584 = vmatprep.subr.mxu0 0.0
    %585 = vmatpush1.msra.mxu0 0.0
    %586 = vmatprep.subr.mxu0 0.0
    %587 = vmatpush1.msra.mxu0 0.0
    %588 = vmatprep.subr.mxu0 0.0
    %589 = vmatpush1.msra.mxu0 0.0
    %590 = vmatprep.subr.mxu0 0.0
    %591 = vmatpush1.msra.mxu0 0.0
    %592 = vmatprep.mubr.f32.mxu0 0.0
    %v593 = vand.u32 %v521, 4294901760
    %v594 = vsub.f32 %v521, %v593
    %v595 = vand.u32 %v594, 4294901760
    %v596 = vsub.f32 %v594, %v595
    %v597 = vand.u32 %v596, 4294901760
    %598 = vmatmul.mubr.f32.gmra.mrb[0].mxu0 %v597
    %v599 = vpop.f32.mrb[0].mxu0
    %v600 = vadd.f32 %v516, %v599
    %v601 = vpop.f32.mrb[0].mxu0
    %602 = vdwg.mxu0
    %603 = vmatprep.subr.mxu0 0.0
    %v604 = vand.u32 %v61, 4294901760
    %v605 = vsub.f32 %v61, %v604
    %v606 = vand.u32 %v605, 4294901760
    %v607 = vsub.f32 %v605, %v606
    %v608 = vand.u32 %v607, 4294901760
    %609 = vmatpush1.msra.mxu0 %v608
    %610 = vmatprep.subr.mxu0 0.0
    %v611 = vand.u32 %v524, 4294901760
    %v612 = vsub.f32 %v524, %v611
    %v613 = vand.u32 %v612, 4294901760
    %v614 = vsub.f32 %v612, %v613
    %v615 = vand.u32 %v614, 4294901760
    %616 = vmatpush1.msra.mxu0 %v615
    %617 = vmatprep.subr.mxu0 0.0
    %618 = vmatpush1.msra.mxu0 0.0
    %619 = vmatprep.subr.mxu0 0.0
    %620 = vmatpush1.msra.mxu0 0.0
    %621 = vmatprep.subr.mxu0 0.0
    %622 = vmatpush1.msra.mxu0 0.0
    %623 = vmatprep.subr.mxu0 0.0
    %624 = vmatpush1.msra.mxu0 0.0
    %625 = vmatprep.subr.mxu0 0.0
    %626 = vmatpush1.msra.mxu0 0.0
    %627 = vmatprep.subr.mxu0 0.0
    %628 = vmatpush1.msra.mxu0 0.0
    %629 = vmatprep.subr.mxu0 0.0
    %630 = vmatpush1.msra.mxu0 0.0
    %631 = vmatprep.subr.mxu0 0.0
    %632 = vmatpush1.msra.mxu0 0.0
    %633 = vmatprep.subr.mxu0 0.0
    %634 = vmatpush1.msra.mxu0 0.0
    %635 = vmatprep.subr.mxu0 0.0
    %636 = vmatpush1.msra.mxu0 0.0
    %637 = vmatprep.subr.mxu0 0.0
    %638 = vmatpush1.msra.mxu0 0.0
    %639 = vmatprep.subr.mxu0 0.0
    %640 = vmatpush1.msra.mxu0 0.0
    %641 = vmatprep.subr.mxu0 0.0
    %642 = vmatpush1.msra.mxu0 0.0
    %643 = vmatprep.subr.mxu0 0.0
    %644 = vmatpush1.msra.mxu0 0.0
    %645 = vmatprep.subr.mxu0 0.0
    %646 = vmatpush1.msra.mxu0 0.0
    %647 = vmatprep.subr.mxu0 0.0
    %648 = vmatpush1.msra.mxu0 0.0
    %649 = vmatprep.subr.mxu0 0.0
    %650 = vmatpush1.msra.mxu0 0.0
    %651 = vmatprep.subr.mxu0 0.0
    %652 = vmatpush1.msra.mxu0 0.0
    %653 = vmatprep.subr.mxu0 0.0
    %654 = vmatpush1.msra.mxu0 0.0
    %655 = vmatprep.subr.mxu0 0.0
    %656 = vmatpush1.msra.mxu0 0.0
    %657 = vmatprep.subr.mxu0 0.0
    %658 = vmatpush1.msra.mxu0 0.0
    %659 = vmatprep.subr.mxu0 0.0
    %660 = vmatpush1.msra.mxu0 0.0
    %661 = vmatprep.subr.mxu0 0.0
    %662 = vmatpush1.msra.mxu0 0.0
    %663 = vmatprep.subr.mxu0 0.0
    %664 = vmatpush1.msra.mxu0 0.0
    %665 = vmatprep.subr.mxu0 0.0
    %666 = vmatpush1.msra.mxu0 0.0
    %667 = vmatprep.subr.mxu0 0.0
    %668 = vmatpush1.msra.mxu0 0.0
    %669 = vmatprep.subr.mxu0 0.0
    %670 = vmatpush1.msra.mxu0 0.0
    %671 = vmatprep.subr.mxu0 0.0
    %672 = vmatpush1.msra.mxu0 0.0
    %673 = vmatprep.subr.mxu0 0.0
    %674 = vmatpush1.msra.mxu0 0.0
    %675 = vmatprep.subr.mxu0 0.0
    %676 = vmatpush1.msra.mxu0 0.0
    %677 = vmatprep.mubr.f32.mxu0 0.0
    %v678 = vand.u32 %v521, 4294901760
    %679 = vmatmul.mubr.f32.gmra.mrb[0].mxu0 %v678
    %v680 = vpop.f32.mrb[0].mxu0
    %v681 = vadd.f32 %v600, %v680
    %v682 = vpop.f32.mrb[0].mxu0
    %683 = vdwg.mxu0
    %684 = vmatprep.subr.mxu0 0.0
    %v685 = vand.u32 %v61, 4294901760
    %v686 = vsub.f32 %v61, %v685
    %687 = vmatpush1.msra.mxu0 %v686
    %688 = vmatprep.subr.mxu0 0.0
    %v689 = vand.u32 %v524, 4294901760
    %v690 = vsub.f32 %v524, %v689
    %691 = vmatpush1.msra.mxu0 %v690
    %692 = vmatprep.subr.mxu0 0.0
    %693 = vmatpush1.msra.mxu0 0.0
    %694 = vmatprep.subr.mxu0 0.0
    %695 = vmatpush1.msra.mxu0 0.0
    %696 = vmatprep.subr.mxu0 0.0
    %697 = vmatpush1.msra.mxu0 0.0
    %698 = vmatprep.subr.mxu0 0.0
    %699 = vmatpush1.msra.mxu0 0.0
    %700 = vmatprep.subr.mxu0 0.0
    %701 = vmatpush1.msra.mxu0 0.0
    %702 = vmatprep.subr.mxu0 0.0
    %703 = vmatpush1.msra.mxu0 0.0
    %704 = vmatprep.subr.mxu0 0.0
    %705 = vmatpush1.msra.mxu0 0.0
    %706 = vmatprep.subr.mxu0 0.0
    %707 = vmatpush1.msra.mxu0 0.0
    %708 = vmatprep.subr.mxu0 0.0
    %709 = vmatpush1.msra.mxu0 0.0
    %710 = vmatprep.subr.mxu0 0.0
    %711 = vmatpush1.msra.mxu0 0.0
    %712 = vmatprep.subr.mxu0 0.0
    %713 = vmatpush1.msra.mxu0 0.0
    %714 = vmatprep.subr.mxu0 0.0
    %715 = vmatpush1.msra.mxu0 0.0
    %716 = vmatprep.subr.mxu0 0.0
    %717 = vmatpush1.msra.mxu0 0.0
    %718 = vmatprep.subr.mxu0 0.0
    %719 = vmatpush1.msra.mxu0 0.0
    %720 = vmatprep.subr.mxu0 0.0
    %721 = vmatpush1.msra.mxu0 0.0
    %722 = vmatprep.subr.mxu0 0.0
    %723 = vmatpush1.msra.mxu0 0.0
    %724 = vmatprep.subr.mxu0 0.0
    %725 = vmatpush1.msra.mxu0 0.0
    %726 = vmatprep.subr.mxu0 0.0
    %727 = vmatpush1.msra.mxu0 0.0
    %728 = vmatprep.subr.mxu0 0.0
    %729 = vmatpush1.msra.mxu0 0.0
    %730 = vmatprep.subr.mxu0 0.0
    %731 = vmatpush1.msra.mxu0 0.0
    %732 = vmatprep.subr.mxu0 0.0
    %733 = vmatpush1.msra.mxu0 0.0
    %734 = vmatprep.subr.mxu0 0.0
    %735 = vmatpush1.msra.mxu0 0.0
    %736 = vmatprep.subr.mxu0 0.0
    %737 = vmatpush1.msra.mxu0 0.0
    %738 = vmatprep.subr.mxu0 0.0
    %739 = vmatpush1.msra.mxu0 0.0
    %740 = vmatprep.subr.mxu0 0.0
    %741 = vmatpush1.msra.mxu0 0.0
    %742 = vmatprep.subr.mxu0 0.0
    %743 = vmatpush1.msra.mxu0 0.0
    %744 = vmatprep.subr.mxu0 0.0
    %745 = vmatpush1.msra.mxu0 0.0
    %746 = vmatprep.subr.mxu0 0.0
    %747 = vmatpush1.msra.mxu0 0.0
    %748 = vmatprep.subr.mxu0 0.0
    %749 = vmatpush1.msra.mxu0 0.0
    %750 = vmatprep.subr.mxu0 0.0
    %751 = vmatpush1.msra.mxu0 0.0
    %752 = vmatprep.mubr.f32.mxu0 0.0
    %v753 = vand.u32 %v521, 4294901760
    %v754 = vsub.f32 %v521, %v753
    %755 = vmatmul.mubr.f32.gmra.mrb[0].mxu0 %v754
    %v756 = vpop.f32.mrb[0].mxu0
    %v757 = vadd.f32 %v681, %v756
    %v758 = vpop.f32.mrb[0].mxu0
    %759 = vdwg.mxu0
    %760 = vmatprep.subr.mxu0 0.0
    %v761 = vand.u32 %v61, 4294901760
    %762 = vmatpush1.msra.mxu0 %v761
    %763 = vmatprep.subr.mxu0 0.0
    %v764 = vand.u32 %v524, 4294901760
    %765 = vmatpush1.msra.mxu0 %v764
    %766 = vmatprep.subr.mxu0 0.0
    %767 = vmatpush1.msra.mxu0 0.0
    %768 = vmatprep.subr.mxu0 0.0
    %769 = vmatpush1.msra.mxu0 0.0
    %770 = vmatprep.subr.mxu0 0.0
    %771 = vmatpush1.msra.mxu0 0.0
    %772 = vmatprep.subr.mxu0 0.0
    %773 = vmatpush1.msra.mxu0 0.0
    %774 = vmatprep.subr.mxu0 0.0
    %775 = vmatpush1.msra.mxu0 0.0
    %776 = vmatprep.subr.mxu0 0.0
    %777 = vmatpush1.msra.mxu0 0.0
    %778 = vmatprep.subr.mxu0 0.0
    %779 = vmatpush1.msra.mxu0 0.0
    %780 = vmatprep.subr.mxu0 0.0
    %781 = vmatpush1.msra.mxu0 0.0
    %782 = vmatprep.subr.mxu0 0.0
    %783 = vmatpush1.msra.mxu0 0.0
    %784 = vmatprep.subr.mxu0 0.0
    %785 = vmatpush1.msra.mxu0 0.0
    %786 = vmatprep.subr.mxu0 0.0
    %787 = vmatpush1.msra.mxu0 0.0
    %788 = vmatprep.subr.mxu0 0.0
    %789 = vmatpush1.msra.mxu0 0.0
    %790 = vmatprep.subr.mxu0 0.0
    %791 = vmatpush1.msra.mxu0 0.0
    %792 = vmatprep.subr.mxu0 0.0
    %793 = vmatpush1.msra.mxu0 0.0
    %794 = vmatprep.subr.mxu0 0.0
    %795 = vmatpush1.msra.mxu0 0.0
    %796 = vmatprep.subr.mxu0 0.0
    %797 = vmatpush1.msra.mxu0 0.0
    %798 = vmatprep.subr.mxu0 0.0
    %799 = vmatpush1.msra.mxu0 0.0
    %800 = vmatprep.subr.mxu0 0.0
    %801 = vmatpush1.msra.mxu0 0.0
    %802 = vmatprep.subr.mxu0 0.0
    %803 = vmatpush1.msra.mxu0 0.0
    %804 = vmatprep.subr.mxu0 0.0
    %805 = vmatpush1.msra.mxu0 0.0
    %806 = vmatprep.subr.mxu0 0.0
    %807 = vmatpush1.msra.mxu0 0.0
    %808 = vmatprep.subr.mxu0 0.0
    %809 = vmatpush1.msra.mxu0 0.0
    %810 = vmatprep.subr.mxu0 0.0
    %811 = vmatpush1.msra.mxu0 0.0
    %812 = vmatprep.subr.mxu0 0.0
    %813 = vmatpush1.msra.mxu0 0.0
    %814 = vmatprep.subr.mxu0 0.0
    %815 = vmatpush1.msra.mxu0 0.0
    %816 = vmatprep.subr.mxu0 0.0
    %817 = vmatpush1.msra.mxu0 0.0
    %818 = vmatprep.subr.mxu0 0.0
    %819 = vmatpush1.msra.mxu0 0.0
    %820 = vmatprep.subr.mxu0 0.0
    %821 = vmatpush1.msra.mxu0 0.0
    %822 = vmatprep.subr.mxu0 0.0
    %823 = vmatpush1.msra.mxu0 0.0
    %824 = vmatprep.subr.mxu0 0.0
    %825 = vmatpush1.msra.mxu0 0.0
    %826 = vmatprep.mubr.f32.mxu0 0.0
    %v827 = vand.u32 %v521, 4294901760
    %v828 = vsub.f32 %v521, %v827
    %v829 = vand.u32 %v828, 4294901760
    %830 = vmatmul.mubr.f32.gmra.mrb[0].mxu0 %v829
    %v831 = vpop.f32.mrb[0].mxu0
    %v832 = vadd.f32 %v757, %v831
    %v833 = vpop.f32.mrb[0].mxu0
    %834 = vdwg.mxu0
    %835 = vmatprep.subr.mxu0 0.0
    %v836 = vand.u32 %v61, 4294901760
    %v837 = vsub.f32 %v61, %v836
    %v838 = vand.u32 %v837, 4294901760
    %839 = vmatpush1.msra.mxu0 %v838
    %840 = vmatprep.subr.mxu0 0.0
    %v841 = vand.u32 %v524, 4294901760
    %v842 = vsub.f32 %v524, %v841
    %v843 = vand.u32 %v842, 4294901760
    %844 = vmatpush1.msra.mxu0 %v843
    %845 = vmatprep.subr.mxu0 0.0
    %846 = vmatpush1.msra.mxu0 0.0
    %847 = vmatprep.subr.mxu0 0.0
    %848 = vmatpush1.msra.mxu0 0.0
    %849 = vmatprep.subr.mxu0 0.0
    %850 = vmatpush1.msra.mxu0 0.0
    %851 = vmatprep.subr.mxu0 0.0
    %852 = vmatpush1.msra.mxu0 0.0
    %853 = vmatprep.subr.mxu0 0.0
    %854 = vmatpush1.msra.mxu0 0.0
    %855 = vmatprep.subr.mxu0 0.0
    %856 = vmatpush1.msra.mxu0 0.0
    %857 = vmatprep.subr.mxu0 0.0
    %858 = vmatpush1.msra.mxu0 0.0
    %859 = vmatprep.subr.mxu0 0.0
    %860 = vmatpush1.msra.mxu0 0.0
    %861 = vmatprep.subr.mxu0 0.0
    %862 = vmatpush1.msra.mxu0 0.0
    %863 = vmatprep.subr.mxu0 0.0
    %864 = vmatpush1.msra.mxu0 0.0
    %865 = vmatprep.subr.mxu0 0.0
    %866 = vmatpush1.msra.mxu0 0.0
    %867 = vmatprep.subr.mxu0 0.0
    %868 = vmatpush1.msra.mxu0 0.0
    %869 = vmatprep.subr.mxu0 0.0
    %870 = vmatpush1.msra.mxu0 0.0
    %871 = vmatprep.subr.mxu0 0.0
    %872 = vmatpush1.msra.mxu0 0.0
    %873 = vmatprep.subr.mxu0 0.0
    %874 = vmatpush1.msra.mxu0 0.0
    %875 = vmatprep.subr.mxu0 0.0
    %876 = vmatpush1.msra.mxu0 0.0
    %877 = vmatprep.subr.mxu0 0.0
    %878 = vmatpush1.msra.mxu0 0.0
    %879 = vmatprep.subr.mxu0 0.0
    %880 = vmatpush1.msra.mxu0 0.0
    %881 = vmatprep.subr.mxu0 0.0
    %882 = vmatpush1.msra.mxu0 0.0
    %883 = vmatprep.subr.mxu0 0.0
    %884 = vmatpush1.msra.mxu0 0.0
    %885 = vmatprep.subr.mxu0 0.0
    %886 = vmatpush1.msra.mxu0 0.0
    %887 = vmatprep.subr.mxu0 0.0
    %888 = vmatpush1.msra.mxu0 0.0
    %889 = vmatprep.subr.mxu0 0.0
    %890 = vmatpush1.msra.mxu0 0.0
    %891 = vmatprep.subr.mxu0 0.0
    %892 = vmatpush1.msra.mxu0 0.0
    %893 = vmatprep.subr.mxu0 0.0
    %894 = vmatpush1.msra.mxu0 0.0
    %895 = vmatprep.subr.mxu0 0.0
    %896 = vmatpush1.msra.mxu0 0.0
    %897 = vmatprep.subr.mxu0 0.0
    %898 = vmatpush1.msra.mxu0 0.0
    %899 = vmatprep.subr.mxu0 0.0
    %900 = vmatpush1.msra.mxu0 0.0
    %901 = vmatprep.subr.mxu0 0.0
    %902 = vmatpush1.msra.mxu0 0.0
    %903 = vmatprep.subr.mxu0 0.0
    %904 = vmatpush1.msra.mxu0 0.0
    %905 = vmatprep.mubr.f32.mxu0 0.0
    %v906 = vand.u32 %v521, 4294901760
    %907 = vmatmul.mubr.f32.gmra.mrb[0].mxu0 %v906
    %v908 = vpop.f32.mrb[0].mxu0
    %v909 = vadd.f32 %v832, %v908
    %v910 = vpop.f32.mrb[0].mxu0
    %911 = vdwg.mxu0
    %912 = vmatprep.subr.mxu0 0.0
    %v913 = vand.u32 %v61, 4294901760
    %914 = vmatpush1.msra.mxu0 %v913
    %915 = vmatprep.subr.mxu0 0.0
    %v916 = vand.u32 %v524, 4294901760
    %917 = vmatpush1.msra.mxu0 %v916
    %918 = vmatprep.subr.mxu0 0.0
    %919 = vmatpush1.msra.mxu0 0.0
    %920 = vmatprep.subr.mxu0 0.0
    %921 = vmatpush1.msra.mxu0 0.0
    %922 = vmatprep.subr.mxu0 0.0
    %923 = vmatpush1.msra.mxu0 0.0
    %924 = vmatprep.subr.mxu0 0.0
    %925 = vmatpush1.msra.mxu0 0.0
    %926 = vmatprep.subr.mxu0 0.0
    %927 = vmatpush1.msra.mxu0 0.0
    %928 = vmatprep.subr.mxu0 0.0
    %929 = vmatpush1.msra.mxu0 0.0
    %930 = vmatprep.subr.mxu0 0.0
    %931 = vmatpush1.msra.mxu0 0.0
    %932 = vmatprep.subr.mxu0 0.0
    %933 = vmatpush1.msra.mxu0 0.0
    %934 = vmatprep.subr.mxu0 0.0
    %935 = vmatpush1.msra.mxu0 0.0
    %936 = vmatprep.subr.mxu0 0.0
    %937 = vmatpush1.msra.mxu0 0.0
    %938 = vmatprep.subr.mxu0 0.0
    %939 = vmatpush1.msra.mxu0 0.0
    %940 = vmatprep.subr.mxu0 0.0
    %941 = vmatpush1.msra.mxu0 0.0
    %942 = vmatprep.subr.mxu0 0.0
    %943 = vmatpush1.msra.mxu0 0.0
    %944 = vmatprep.subr.mxu0 0.0
    %945 = vmatpush1.msra.mxu0 0.0
    %946 = vmatprep.subr.mxu0 0.0
    %947 = vmatpush1.msra.mxu0 0.0
    %948 = vmatprep.subr.mxu0 0.0
    %949 = vmatpush1.msra.mxu0 0.0
    %950 = vmatprep.subr.mxu0 0.0
    %951 = vmatpush1.msra.mxu0 0.0
    %952 = vmatprep.subr.mxu0 0.0
    %953 = vmatpush1.msra.mxu0 0.0
    %954 = vmatprep.subr.mxu0 0.0
    %955 = vmatpush1.msra.mxu0 0.0
    %956 = vmatprep.subr.mxu0 0.0
    %957 = vmatpush1.msra.mxu0 0.0
    %958 = vmatprep.subr.mxu0 0.0
    %959 = vmatpush1.msra.mxu0 0.0
    %960 = vmatprep.subr.mxu0 0.0
    %961 = vmatpush1.msra.mxu0 0.0
    %962 = vmatprep.subr.mxu0 0.0
    %963 = vmatpush1.msra.mxu0 0.0
    %964 = vmatprep.subr.mxu0 0.0
    %965 = vmatpush1.msra.mxu0 0.0
    %966 = vmatprep.subr.mxu0 0.0
    %967 = vmatpush1.msra.mxu0 0.0
    %968 = vmatprep.subr.mxu0 0.0
    %969 = vmatpush1.msra.mxu0 0.0
    %970 = vmatprep.subr.mxu0 0.0
    %971 = vmatpush1.msra.mxu0 0.0
    %972 = vmatprep.subr.mxu0 0.0
    %973 = vmatpush1.msra.mxu0 0.0
    %974 = vmatprep.subr.mxu0 0.0
    %975 = vmatpush1.msra.mxu0 0.0
    %976 = vmatprep.subr.mxu0 0.0
    %977 = vmatpush1.msra.mxu0 0.0
    %978 = vmatprep.mubr.f32.mxu0 0.0
    %v979 = vand.u32 %v521, 4294901760
    %980 = vmatmul.mubr.f32.gmra.mrb[0].mxu0 %v979
    %v981 = vpop.f32.mrb[0].mxu0
    %v982 = vadd.f32 %v909, %v981
    %v983 = vpop.f32.mrb[0].mxu0
    %984 = vdwg.mxu0
    %v985 = vld [vmem:[%s4] sm:$0x1]
    %v987 = vlaneseq
    %v988 = vshrl.u32 %v987, 7
    %v989 = vsub.s32 0, %v988
    %v990 = vrot.slane %v985, %v989
    %v992 = vadd.f32 %v982, %v990
    %v993 = vmax.f32 %v992, 0.0
    %v994 = vld [vmem:[#allocation5] sm:$0xff]
    %v995 = vld [vmem:[#allocation5 + $0x8] sm:$0xff]
    %v996 = vld [vmem:[#allocation5 + $0x10] sm:$0xff]
    %v997 = vld [vmem:[#allocation5 + $0x18] sm:$0xff]
    %v998 = vld [vmem:[#allocation5 + $0x20] sm:$0xff]
    %v999 = vld [vmem:[#allocation5 + $0x28] sm:$0xff]
    %v1000 = vld [vmem:[#allocation5 + $0x30] sm:$0xff]
    %v1001 = vld [vmem:[#allocation5 + $0x38] sm:$0xff]
    %v1002 = vld [vmem:[%s6] sm:$0x1]
    %v1004 = vlaneseq
    %v1005 = vshrl.u32 %v1004, 7
    %v1006 = vsub.s32 0, %v1005
    %v1007 = vrot.slane %v1002, %v1006
    %vm1009 = vcmask 523264
    %v1011 = vsel %vm1009, %v993, 0
    %1013 = vmatprep.subr.mxu0 0.0
    %v1014 = vand.u32 %v994, 4294901760
    %1015 = vmatpush1.msra.mxu0 %v1014
    %1016 = vmatprep.subr.mxu0 0.0
    %v1017 = vand.u32 %v995, 4294901760
    %1018 = vmatpush1.msra.mxu0 %v1017
    %1019 = vmatprep.subr.mxu0 0.0
    %v1020 = vand.u32 %v996, 4294901760
    %1021 = vmatpush1.msra.mxu0 %v1020
    %1022 = vmatprep.subr.mxu0 0.0
    %v1023 = vand.u32 %v997, 4294901760
    %1024 = vmatpush1.msra.mxu0 %v1023
    %1025 = vmatprep.subr.mxu0 0.0
    %v1026 = vand.u32 %v998, 4294901760
    %1027 = vmatpush1.msra.mxu0 %v1026
    %1028 = vmatprep.subr.mxu0 0.0
    %v1029 = vand.u32 %v999, 4294901760
    %1030 = vmatpush1.msra.mxu0 %v1029
    %1031 = vmatprep.subr.mxu0 0.0
    %v1032 = vand.u32 %v1000, 4294901760
    %1033 = vmatpush1.msra.mxu0 %v1032
    %1034 = vmatprep.subr.mxu0 0.0
    %v1035 = vand.u32 %v1001, 4294901760
    %1036 = vmatpush1.msra.mxu0 %v1035
    %1037 = vmatprep.subr.mxu0 0.0
    %1038 = vmatpush1.msra.mxu0 0.0
    %1039 = vmatprep.subr.mxu0 0.0
    %1040 = vmatpush1.msra.mxu0 0.0
    %1041 = vmatprep.subr.mxu0 0.0
    %1042 = vmatpush1.msra.mxu0 0.0
    %1043 = vmatprep.subr.mxu0 0.0
    %1044 = vmatpush1.msra.mxu0 0.0
    %1045 = vmatprep.subr.mxu0 0.0
    %1046 = vmatpush1.msra.mxu0 0.0
    %1047 = vmatprep.subr.mxu0 0.0
    %1048 = vmatpush1.msra.mxu0 0.0
    %1049 = vmatprep.subr.mxu0 0.0
    %1050 = vmatpush1.msra.mxu0 0.0
    %1051 = vmatprep.subr.mxu0 0.0
    %1052 = vmatpush1.msra.mxu0 0.0
    %1053 = vmatprep.subr.mxu0 0.0
    %1054 = vmatpush1.msra.mxu0 0.0
    %1055 = vmatprep.subr.mxu0 0.0
    %1056 = vmatpush1.msra.mxu0 0.0
    %1057 = vmatprep.subr.mxu0 0.0
    %1058 = vmatpush1.msra.mxu0 0.0
    %1059 = vmatprep.subr.mxu0 0.0
    %1060 = vmatpush1.msra.mxu0 0.0
    %1061 = vmatprep.subr.mxu0 0.0
    %1062 = vmatpush1.msra.mxu0 0.0
    %1063 = vmatprep.subr.mxu0 0.0
    %1064 = vmatpush1.msra.mxu0 0.0
    %1065 = vmatprep.subr.mxu0 0.0
    %1066 = vmatpush1.msra.mxu0 0.0
    %1067 = vmatprep.subr.mxu0 0.0
    %1068 = vmatpush1.msra.mxu0 0.0
    %1069 = vmatprep.subr.mxu0 0.0
    %1070 = vmatpush1.msra.mxu0 0.0
    %1071 = vmatprep.subr.mxu0 0.0
    %1072 = vmatpush1.msra.mxu0 0.0
    %1073 = vmatprep.subr.mxu0 0.0
    %1074 = vmatpush1.msra.mxu0 0.0
    %1075 = vmatprep.subr.mxu0 0.0
    %1076 = vmatpush1.msra.mxu0 0.0
    %1077 = vmatprep.subr.mxu0 0.0
    %1078 = vmatpush1.msra.mxu0 0.0
    %1079 = vmatprep.subr.mxu0 0.0
    %1080 = vmatpush1.msra.mxu0 0.0
    %1081 = vmatprep.subr.mxu0 0.0
    %1082 = vmatpush1.msra.mxu0 0.0
    %1083 = vmatprep.subr.mxu0 0.0
    %1084 = vmatpush1.msra.mxu0 0.0
    %1085 = vmatprep.mubr.f32.mxu0 0.0
    %v1086 = vand.u32 %v1011, 4294901760
    %v1087 = vsub.f32 %v1011, %v1086
    %v1088 = vand.u32 %v1087, 4294901760
    %v1089 = vsub.f32 %v1087, %v1088
    %v1090 = vand.u32 %v1089, 4294901760
    %1091 = vmatmul.mubr.f32.gmra.mrb[0].mxu0 %v1090
    %v1092 = vpop.f32.mrb[0].mxu0
    %v1093 = vadd.f32 %v1007, %v1092
    %v1094 = vpop.f32.mrb[0].mxu0
    %1095 = vdwg.mxu0
    %1096 = vmatprep.subr.mxu0 0.0
    %v1097 = vand.u32 %v994, 4294901760
    %v1098 = vsub.f32 %v994, %v1097
    %v1099 = vand.u32 %v1098, 4294901760
    %v1100 = vsub.f32 %v1098, %v1099
    %v1101 = vand.u32 %v1100, 4294901760
    %1102 = vmatpush1.msra.mxu0 %v1101
    %1103 = vmatprep.subr.mxu0 0.0
    %v1104 = vand.u32 %v995, 4294901760
    %v1105 = vsub.f32 %v995, %v1104
    %v1106 = vand.u32 %v1105, 4294901760
    %v1107 = vsub.f32 %v1105, %v1106
    %v1108 = vand.u32 %v1107, 4294901760
    %1109 = vmatpush1.msra.mxu0 %v1108
    %1110 = vmatprep.subr.mxu0 0.0
    %v1111 = vand.u32 %v996, 4294901760
    %v1112 = vsub.f32 %v996, %v1111
    %v1113 = vand.u32 %v1112, 4294901760
    %v1114 = vsub.f32 %v1112, %v1113
    %v1115 = vand.u32 %v1114, 4294901760
    %1116 = vmatpush1.msra.mxu0 %v1115
    %1117 = vmatprep.subr.mxu0 0.0
    %v1118 = vand.u32 %v997, 4294901760
    %v1119 = vsub.f32 %v997, %v1118
    %v1120 = vand.u32 %v1119, 4294901760
    %v1121 = vsub.f32 %v1119, %v1120
    %v1122 = vand.u32 %v1121, 4294901760
    %1123 = vmatpush1.msra.mxu0 %v1122
    %1124 = vmatprep.subr.mxu0 0.0
    %v1125 = vand.u32 %v998, 4294901760
    %v1126 = vsub.f32 %v998, %v1125
    %v1127 = vand.u32 %v1126, 4294901760
    %v1128 = vsub.f32 %v1126, %v1127
    %v1129 = vand.u32 %v1128, 4294901760
    %1130 = vmatpush1.msra.mxu0 %v1129
    %1131 = vmatprep.subr.mxu0 0.0
    %v1132 = vand.u32 %v999, 4294901760
    %v1133 = vsub.f32 %v999, %v1132
    %v1134 = vand.u32 %v1133, 4294901760
    %v1135 = vsub.f32 %v1133, %v1134
    %v1136 = vand.u32 %v1135, 4294901760
    %1137 = vmatpush1.msra.mxu0 %v1136
    %1138 = vmatprep.subr.mxu0 0.0
    %v1139 = vand.u32 %v1000, 4294901760
    %v1140 = vsub.f32 %v1000, %v1139
    %v1141 = vand.u32 %v1140, 4294901760
    %v1142 = vsub.f32 %v1140, %v1141
    %v1143 = vand.u32 %v1142, 4294901760
    %1144 = vmatpush1.msra.mxu0 %v1143
    %1145 = vmatprep.subr.mxu0 0.0
    %v1146 = vand.u32 %v1001, 4294901760
    %v1147 = vsub.f32 %v1001, %v1146
    %v1148 = vand.u32 %v1147, 4294901760
    %v1149 = vsub.f32 %v1147, %v1148
    %v1150 = vand.u32 %v1149, 4294901760
    %1151 = vmatpush1.msra.mxu0 %v1150
    %1152 = vmatprep.subr.mxu0 0.0
    %1153 = vmatpush1.msra.mxu0 0.0
    %1154 = vmatprep.subr.mxu0 0.0
    %1155 = vmatpush1.msra.mxu0 0.0
    %1156 = vmatprep.subr.mxu0 0.0
    %1157 = vmatpush1.msra.mxu0 0.0
    %1158 = vmatprep.subr.mxu0 0.0
    %1159 = vmatpush1.msra.mxu0 0.0
    %1160 = vmatprep.subr.mxu0 0.0
    %1161 = vmatpush1.msra.mxu0 0.0
    %1162 = vmatprep.subr.mxu0 0.0
    %1163 = vmatpush1.msra.mxu0 0.0
    %1164 = vmatprep.subr.mxu0 0.0
    %1165 = vmatpush1.msra.mxu0 0.0
    %1166 = vmatprep.subr.mxu0 0.0
    %1167 = vmatpush1.msra.mxu0 0.0
    %1168 = vmatprep.subr.mxu0 0.0
    %1169 = vmatpush1.msra.mxu0 0.0
    %1170 = vmatprep.subr.mxu0 0.0
    %1171 = vmatpush1.msra.mxu0 0.0
    %1172 = vmatprep.subr.mxu0 0.0
    %1173 = vmatpush1.msra.mxu0 0.0
    %1174 = vmatprep.subr.mxu0 0.0
    %1175 = vmatpush1.msra.mxu0 0.0
    %1176 = vmatprep.subr.mxu0 0.0
    %1177 = vmatpush1.msra.mxu0 0.0
    %1178 = vmatprep.subr.mxu0 0.0
    %1179 = vmatpush1.msra.mxu0 0.0
    %1180 = vmatprep.subr.mxu0 0.0
    %1181 = vmatpush1.msra.mxu0 0.0
    %1182 = vmatprep.subr.mxu0 0.0
    %1183 = vmatpush1.msra.mxu0 0.0
    %1184 = vmatprep.subr.mxu0 0.0
    %1185 = vmatpush1.msra.mxu0 0.0
    %1186 = vmatprep.subr.mxu0 0.0
    %1187 = vmatpush1.msra.mxu0 0.0
    %1188 = vmatprep.subr.mxu0 0.0
    %1189 = vmatpush1.msra.mxu0 0.0
    %1190 = vmatprep.subr.mxu0 0.0
    %1191 = vmatpush1.msra.mxu0 0.0
    %1192 = vmatprep.subr.mxu0 0.0
    %1193 = vmatpush1.msra.mxu0 0.0
    %1194 = vmatprep.subr.mxu0 0.0
    %1195 = vmatpush1.msra.mxu0 0.0
    %1196 = vmatprep.subr.mxu0 0.0
    %1197 = vmatpush1.msra.mxu0 0.0
    %1198 = vmatprep.subr.mxu0 0.0
    %1199 = vmatpush1.msra.mxu0 0.0
    %1200 = vmatprep.mubr.f32.mxu0 0.0
    %v1201 = vand.u32 %v1011, 4294901760
    %1202 = vmatmul.mubr.f32.gmra.mrb[0].mxu0 %v1201
    %v1203 = vpop.f32.mrb[0].mxu0
    %v1204 = vadd.f32 %v1093, %v1203
    %v1205 = vpop.f32.mrb[0].mxu0
    %1206 = vdwg.mxu0
    %1207 = vmatprep.subr.mxu0 0.0
    %v1208 = vand.u32 %v994, 4294901760
    %v1209 = vsub.f32 %v994, %v1208
    %1210 = vmatpush1.msra.mxu0 %v1209
    %1211 = vmatprep.subr.mxu0 0.0
    %v1212 = vand.u32 %v995, 4294901760
    %v1213 = vsub.f32 %v995, %v1212
    %1214 = vmatpush1.msra.mxu0 %v1213
    %1215 = vmatprep.subr.mxu0 0.0
    %v1216 = vand.u32 %v996, 4294901760
    %v1217 = vsub.f32 %v996, %v1216
    %1218 = vmatpush1.msra.mxu0 %v1217
    %1219 = vmatprep.subr.mxu0 0.0
    %v1220 = vand.u32 %v997, 4294901760
    %v1221 = vsub.f32 %v997, %v1220
    %1222 = vmatpush1.msra.mxu0 %v1221
    %1223 = vmatprep.subr.mxu0 0.0
    %v1224 = vand.u32 %v998, 4294901760
    %v1225 = vsub.f32 %v998, %v1224
    %1226 = vmatpush1.msra.mxu0 %v1225
    %1227 = vmatprep.subr.mxu0 0.0
    %v1228 = vand.u32 %v999, 4294901760
    %v1229 = vsub.f32 %v999, %v1228
    %1230 = vmatpush1.msra.mxu0 %v1229
    %1231 = vmatprep.subr.mxu0 0.0
    %v1232 = vand.u32 %v1000, 4294901760
    %v1233 = vsub.f32 %v1000, %v1232
    %1234 = vmatpush1.msra.mxu0 %v1233
    %1235 = vmatprep.subr.mxu0 0.0
    %v1236 = vand.u32 %v1001, 4294901760
    %v1237 = vsub.f32 %v1001, %v1236
    %1238 = vmatpush1.msra.mxu0 %v1237
    %1239 = vmatprep.subr.mxu0 0.0
    %1240 = vmatpush1.msra.mxu0 0.0
    %1241 = vmatprep.subr.mxu0 0.0
    %1242 = vmatpush1.msra.mxu0 0.0
    %1243 = vmatprep.subr.mxu0 0.0
    %1244 = vmatpush1.msra.mxu0 0.0
    %1245 = vmatprep.subr.mxu0 0.0
    %1246 = vmatpush1.msra.mxu0 0.0
    %1247 = vmatprep.subr.mxu0 0.0
    %1248 = vmatpush1.msra.mxu0 0.0
    %1249 = vmatprep.subr.mxu0 0.0
    %1250 = vmatpush1.msra.mxu0 0.0
    %1251 = vmatprep.subr.mxu0 0.0
    %1252 = vmatpush1.msra.mxu0 0.0
    %1253 = vmatprep.subr.mxu0 0.0
    %1254 = vmatpush1.msra.mxu0 0.0
    %1255 = vmatprep.subr.mxu0 0.0
    %1256 = vmatpush1.msra.mxu0 0.0
    %1257 = vmatprep.subr.mxu0 0.0
    %1258 = vmatpush1.msra.mxu0 0.0
    %1259 = vmatprep.subr.mxu0 0.0
    %1260 = vmatpush1.msra.mxu0 0.0
    %1261 = vmatprep.subr.mxu0 0.0
    %1262 = vmatpush1.msra.mxu0 0.0
    %1263 = vmatprep.subr.mxu0 0.0
    %1264 = vmatpush1.msra.mxu0 0.0
    %1265 = vmatprep.subr.mxu0 0.0
    %1266 = vmatpush1.msra.mxu0 0.0
    %1267 = vmatprep.subr.mxu0 0.0
    %1268 = vmatpush1.msra.mxu0 0.0
    %1269 = vmatprep.subr.mxu0 0.0
    %1270 = vmatpush1.msra.mxu0 0.0
    %1271 = vmatprep.subr.mxu0 0.0
    %1272 = vmatpush1.msra.mxu0 0.0
    %1273 = vmatprep.subr.mxu0 0.0
    %1274 = vmatpush1.msra.mxu0 0.0
    %1275 = vmatprep.subr.mxu0 0.0
    %1276 = vmatpush1.msra.mxu0 0.0
    %1277 = vmatprep.subr.mxu0 0.0
    %1278 = vmatpush1.msra.mxu0 0.0
    %1279 = vmatprep.subr.mxu0 0.0
    %1280 = vmatpush1.msra.mxu0 0.0
    %1281 = vmatprep.subr.mxu0 0.0
    %1282 = vmatpush1.msra.mxu0 0.0
    %1283 = vmatprep.subr.mxu0 0.0
    %1284 = vmatpush1.msra.mxu0 0.0
    %1285 = vmatprep.subr.mxu0 0.0
    %1286 = vmatpush1.msra.mxu0 0.0
    %1287 = vmatprep.mubr.f32.mxu0 0.0
    %v1288 = vand.u32 %v1011, 4294901760
    %v1289 = vsub.f32 %v1011, %v1288
    %1290 = vmatmul.mubr.f32.gmra.mrb[0].mxu0 %v1289
    %v1291 = vpop.f32.mrb[0].mxu0
    %v1292 = vadd.f32 %v1204, %v1291
    %v1293 = vpop.f32.mrb[0].mxu0
    %1294 = vdwg.mxu0
    %1295 = vmatprep.subr.mxu0 0.0
    %v1296 = vand.u32 %v994, 4294901760
    %1297 = vmatpush1.msra.mxu0 %v1296
    %1298 = vmatprep.subr.mxu0 0.0
    %v1299 = vand.u32 %v995, 4294901760
    %1300 = vmatpush1.msra.mxu0 %v1299
    %1301 = vmatprep.subr.mxu0 0.0
    %v1302 = vand.u32 %v996, 4294901760
    %1303 = vmatpush1.msra.mxu0 %v1302
    %1304 = vmatprep.subr.mxu0 0.0
    %v1305 = vand.u32 %v997, 4294901760
    %1306 = vmatpush1.msra.mxu0 %v1305
    %1307 = vmatprep.subr.mxu0 0.0
    %v1308 = vand.u32 %v998, 4294901760
    %1309 = vmatpush1.msra.mxu0 %v1308
    %1310 = vmatprep.subr.mxu0 0.0
    %v1311 = vand.u32 %v999, 4294901760
    %1312 = vmatpush1.msra.mxu0 %v1311
    %1313 = vmatprep.subr.mxu0 0.0
    %v1314 = vand.u32 %v1000, 4294901760
    %1315 = vmatpush1.msra.mxu0 %v1314
    %1316 = vmatprep.subr.mxu0 0.0
    %v1317 = vand.u32 %v1001, 4294901760
    %1318 = vmatpush1.msra.mxu0 %v1317
    %1319 = vmatprep.subr.mxu0 0.0
    %1320 = vmatpush1.msra.mxu0 0.0
    %1321 = vmatprep.subr.mxu0 0.0
    %1322 = vmatpush1.msra.mxu0 0.0
    %1323 = vmatprep.subr.mxu0 0.0
    %1324 = vmatpush1.msra.mxu0 0.0
    %1325 = vmatprep.subr.mxu0 0.0
    %1326 = vmatpush1.msra.mxu0 0.0
    %1327 = vmatprep.subr.mxu0 0.0
    %1328 = vmatpush1.msra.mxu0 0.0
    %1329 = vmatprep.subr.mxu0 0.0
    %1330 = vmatpush1.msra.mxu0 0.0
    %1331 = vmatprep.subr.mxu0 0.0
    %1332 = vmatpush1.msra.mxu0 0.0
    %1333 = vmatprep.subr.mxu0 0.0
    %1334 = vmatpush1.msra.mxu0 0.0
    %1335 = vmatprep.subr.mxu0 0.0
    %1336 = vmatpush1.msra.mxu0 0.0
    %1337 = vmatprep.subr.mxu0 0.0
    %1338 = vmatpush1.msra.mxu0 0.0
    %1339 = vmatprep.subr.mxu0 0.0
    %1340 = vmatpush1.msra.mxu0 0.0
    %1341 = vmatprep.subr.mxu0 0.0
    %1342 = vmatpush1.msra.mxu0 0.0
    %1343 = vmatprep.subr.mxu0 0.0
    %1344 = vmatpush1.msra.mxu0 0.0
    %1345 = vmatprep.subr.mxu0 0.0
    %1346 = vmatpush1.msra.mxu0 0.0
    %1347 = vmatprep.subr.mxu0 0.0
    %1348 = vmatpush1.msra.mxu0 0.0
    %1349 = vmatprep.subr.mxu0 0.0
    %1350 = vmatpush1.msra.mxu0 0.0
    %1351 = vmatprep.subr.mxu0 0.0
    %1352 = vmatpush1.msra.mxu0 0.0
    %1353 = vmatprep.subr.mxu0 0.0
    %1354 = vmatpush1.msra.mxu0 0.0
    %1355 = vmatprep.subr.mxu0 0.0
    %1356 = vmatpush1.msra.mxu0 0.0
    %1357 = vmatprep.subr.mxu0 0.0
    %1358 = vmatpush1.msra.mxu0 0.0
    %1359 = vmatprep.subr.mxu0 0.0
    %1360 = vmatpush1.msra.mxu0 0.0
    %1361 = vmatprep.subr.mxu0 0.0
    %1362 = vmatpush1.msra.mxu0 0.0
    %1363 = vmatprep.subr.mxu0 0.0
    %1364 = vmatpush1.msra.mxu0 0.0
    %1365 = vmatprep.subr.mxu0 0.0
    %1366 = vmatpush1.msra.mxu0 0.0
    %1367 = vmatprep.mubr.f32.mxu0 0.0
    %v1368 = vand.u32 %v1011, 4294901760
    %v1369 = vsub.f32 %v1011, %v1368
    %v1370 = vand.u32 %v1369, 4294901760
    %1371 = vmatmul.mubr.f32.gmra.mrb[0].mxu0 %v1370
    %v1372 = vpop.f32.mrb[0].mxu0
    %v1373 = vadd.f32 %v1292, %v1372
    %v1374 = vpop.f32.mrb[0].mxu0
    %1375 = vdwg.mxu0
    %1376 = vmatprep.subr.mxu0 0.0
    %v1377 = vand.u32 %v994, 4294901760
    %v1378 = vsub.f32 %v994, %v1377
    %v1379 = vand.u32 %v1378, 4294901760
    %1380 = vmatpush1.msra.mxu0 %v1379
    %1381 = vmatprep.subr.mxu0 0.0
    %v1382 = vand.u32 %v995, 4294901760
    %v1383 = vsub.f32 %v995, %v1382
    %v1384 = vand.u32 %v1383, 4294901760
    %1385 = vmatpush1.msra.mxu0 %v1384
    %1386 = vmatprep.subr.mxu0 0.0
    %v1387 = vand.u32 %v996, 4294901760
    %v1388 = vsub.f32 %v996, %v1387
    %v1389 = vand.u32 %v1388, 4294901760
    %1390 = vmatpush1.msra.mxu0 %v1389
    %1391 = vmatprep.subr.mxu0 0.0
    %v1392 = vand.u32 %v997, 4294901760
    %v1393 = vsub.f32 %v997, %v1392
    %v1394 = vand.u32 %v1393, 4294901760
    %1395 = vmatpush1.msra.mxu0 %v1394
    %1396 = vmatprep.subr.mxu0 0.0
    %v1397 = vand.u32 %v998, 4294901760
    %v1398 = vsub.f32 %v998, %v1397
    %v1399 = vand.u32 %v1398, 4294901760
    %1400 = vmatpush1.msra.mxu0 %v1399
    %1401 = vmatprep.subr.mxu0 0.0
    %v1402 = vand.u32 %v999, 4294901760
    %v1403 = vsub.f32 %v999, %v1402
    %v1404 = vand.u32 %v1403, 4294901760
    %1405 = vmatpush1.msra.mxu0 %v1404
    %1406 = vmatprep.subr.mxu0 0.0
    %v1407 = vand.u32 %v1000, 4294901760
    %v1408 = vsub.f32 %v1000, %v1407
    %v1409 = vand.u32 %v1408, 4294901760
    %1410 = vmatpush1.msra.mxu0 %v1409
    %1411 = vmatprep.subr.mxu0 0.0
    %v1412 = vand.u32 %v1001, 4294901760
    %v1413 = vsub.f32 %v1001, %v1412
    %v1414 = vand.u32 %v1413, 4294901760
    %1415 = vmatpush1.msra.mxu0 %v1414
    %1416 = vmatprep.subr.mxu0 0.0
    %1417 = vmatpush1.msra.mxu0 0.0
    %1418 = vmatprep.subr.mxu0 0.0
    %1419 = vmatpush1.msra.mxu0 0.0
    %1420 = vmatprep.subr.mxu0 0.0
    %1421 = vmatpush1.msra.mxu0 0.0
    %1422 = vmatprep.subr.mxu0 0.0
    %1423 = vmatpush1.msra.mxu0 0.0
    %1424 = vmatprep.subr.mxu0 0.0
    %1425 = vmatpush1.msra.mxu0 0.0
    %1426 = vmatprep.subr.mxu0 0.0
    %1427 = vmatpush1.msra.mxu0 0.0
    %1428 = vmatprep.subr.mxu0 0.0
    %1429 = vmatpush1.msra.mxu0 0.0
    %1430 = vmatprep.subr.mxu0 0.0
    %1431 = vmatpush1.msra.mxu0 0.0
    %1432 = vmatprep.subr.mxu0 0.0
    %1433 = vmatpush1.msra.mxu0 0.0
    %1434 = vmatprep.subr.mxu0 0.0
    %1435 = vmatpush1.msra.mxu0 0.0
    %1436 = vmatprep.subr.mxu0 0.0
    %1437 = vmatpush1.msra.mxu0 0.0
    %1438 = vmatprep.subr.mxu0 0.0
    %1439 = vmatpush1.msra.mxu0 0.0
    %1440 = vmatprep.subr.mxu0 0.0
    %1441 = vmatpush1.msra.mxu0 0.0
    %1442 = vmatprep.subr.mxu0 0.0
    %1443 = vmatpush1.msra.mxu0 0.0
    %1444 = vmatprep.subr.mxu0 0.0
    %1445 = vmatpush1.msra.mxu0 0.0
    %1446 = vmatprep.subr.mxu0 0.0
    %1447 = vmatpush1.msra.mxu0 0.0
    %1448 = vmatprep.subr.mxu0 0.0
    %1449 = vmatpush1.msra.mxu0 0.0
    %1450 = vmatprep.subr.mxu0 0.0
    %1451 = vmatpush1.msra.mxu0 0.0
    %1452 = vmatprep.subr.mxu0 0.0
    %1453 = vmatpush1.msra.mxu0 0.0
    %1454 = vmatprep.subr.mxu0 0.0
    %1455 = vmatpush1.msra.mxu0 0.0
    %1456 = vmatprep.subr.mxu0 0.0
    %1457 = vmatpush1.msra.mxu0 0.0
    %1458 = vmatprep.subr.mxu0 0.0
    %1459 = vmatpush1.msra.mxu0 0.0
    %1460 = vmatprep.subr.mxu0 0.0
    %1461 = vmatpush1.msra.mxu0 0.0
    %1462 = vmatprep.subr.mxu0 0.0
    %1463 = vmatpush1.msra.mxu0 0.0
    %1464 = vmatprep.mubr.f32.mxu0 0.0
    %v1465 = vand.u32 %v1011, 4294901760
    %1466 = vmatmul.mubr.f32.gmra.mrb[0].mxu0 %v1465
    %v1467 = vpop.f32.mrb[0].mxu0
    %v1468 = vadd.f32 %v1373, %v1467
    %v1469 = vpop.f32.mrb[0].mxu0
    %1470 = vdwg.mxu0
    %1471 = vmatprep.subr.mxu0 0.0
    %v1472 = vand.u32 %v994, 4294901760
    %1473 = vmatpush1.msra.mxu0 %v1472
    %1474 = vmatprep.subr.mxu0 0.0
    %v1475 = vand.u32 %v995, 4294901760
    %1476 = vmatpush1.msra.mxu0 %v1475
    %1477 = vmatprep.subr.mxu0 0.0
    %v1478 = vand.u32 %v996, 4294901760
    %1479 = vmatpush1.msra.mxu0 %v1478
    %1480 = vmatprep.subr.mxu0 0.0
    %v1481 = vand.u32 %v997, 4294901760
    %1482 = vmatpush1.msra.mxu0 %v1481
    %1483 = vmatprep.subr.mxu0 0.0
    %v1484 = vand.u32 %v998, 4294901760
    %1485 = vmatpush1.msra.mxu0 %v1484
    %1486 = vmatprep.subr.mxu0 0.0
    %v1487 = vand.u32 %v999, 4294901760
    %1488 = vmatpush1.msra.mxu0 %v1487
    %1489 = vmatprep.subr.mxu0 0.0
    %v1490 = vand.u32 %v1000, 4294901760
    %1491 = vmatpush1.msra.mxu0 %v1490
    %1492 = vmatprep.subr.mxu0 0.0
    %v1493 = vand.u32 %v1001, 4294901760
    %1494 = vmatpush1.msra.mxu0 %v1493
    %1495 = vmatprep.subr.mxu0 0.0
    %1496 = vmatpush1.msra.mxu0 0.0
    %1497 = vmatprep.subr.mxu0 0.0
    %1498 = vmatpush1.msra.mxu0 0.0
    %1499 = vmatprep.subr.mxu0 0.0
    %1500 = vmatpush1.msra.mxu0 0.0
    %1501 = vmatprep.subr.mxu0 0.0
    %1502 = vmatpush1.msra.mxu0 0.0
    %1503 = vmatprep.subr.mxu0 0.0
    %1504 = vmatpush1.msra.mxu0 0.0
    %1505 = vmatprep.subr.mxu0 0.0
    %1506 = vmatpush1.msra.mxu0 0.0
    %1507 = vmatprep.subr.mxu0 0.0
    %1508 = vmatpush1.msra.mxu0 0.0
    %1509 = vmatprep.subr.mxu0 0.0
    %1510 = vmatpush1.msra.mxu0 0.0
    %1511 = vmatprep.subr.mxu0 0.0
    %1512 = vmatpush1.msra.mxu0 0.0
    %1513 = vmatprep.subr.mxu0 0.0
    %1514 = vmatpush1.msra.mxu0 0.0
    %1515 = vmatprep.subr.mxu0 0.0
    %1516 = vmatpush1.msra.mxu0 0.0
    %1517 = vmatprep.subr.mxu0 0.0
    %1518 = vmatpush1.msra.mxu0 0.0
    %1519 = vmatprep.subr.mxu0 0.0
    %1520 = vmatpush1.msra.mxu0 0.0
    %1521 = vmatprep.subr.mxu0 0.0
    %1522 = vmatpush1.msra.mxu0 0.0
    %1523 = vmatprep.subr.mxu0 0.0
    %1524 = vmatpush1.msra.mxu0 0.0
    %1525 = vmatprep.subr.mxu0 0.0
    %1526 = vmatpush1.msra.mxu0 0.0
    %1527 = vmatprep.subr.mxu0 0.0
    %1528 = vmatpush1.msra.mxu0 0.0
    %1529 = vmatprep.subr.mxu0 0.0
    %1530 = vmatpush1.msra.mxu0 0.0
    %1531 = vmatprep.subr.mxu0 0.0
    %1532 = vmatpush1.msra.mxu0 0.0
    %1533 = vmatprep.subr.mxu0 0.0
    %1534 = vmatpush1.msra.mxu0 0.0
    %1535 = vmatprep.subr.mxu0 0.0
    %1536 = vmatpush1.msra.mxu0 0.0
    %1537 = vmatprep.subr.mxu0 0.0
    %1538 = vmatpush1.msra.mxu0 0.0
    %1539 = vmatprep.subr.mxu0 0.0
    %1540 = vmatpush1.msra.mxu0 0.0
    %1541 = vmatprep.subr.mxu0 0.0
    %1542 = vmatpush1.msra.mxu0 0.0
    %1543 = vmatprep.mubr.f32.mxu0 0.0
    %v1544 = vand.u32 %v1011, 4294901760
    %1545 = vmatmul.mubr.f32.gmra.mrb[0].mxu0 %v1544
    %v1546 = vpop.f32.mrb[0].mxu0
    %v1547 = vadd.f32 %v1468, %v1546
    %v1548 = vpop.f32.mrb[0].mxu0
    %1549 = vdwg.mxu0
    %v1550 = vmax.f32 %v1547, 0.0
    %1552 = vrot.lane.b32.xlu0 %v1550, 96
    %v1553 = vpop.permute.xlu0 %1552
    %v1555 = vmul.f32 %v1550, %v1553
    %v1556 = vld [vmem:[%s7] sm:$0x1]
    %v1558 = vlaneseq
    %v1559 = vshrl.u32 %v1558, 7
    %v1560 = vsub.s32 0, %v1559
    %v1561 = vrot.slane %v1556, %v1560
    %v1563 = vmul.f32 %v1555, %v1561
    %vm1564 = vcmask 261120
    %v1565 = vsel %vm1564, %v1563, 0.0
    %1566 = vadd.xlane.f32.xlu0 %v1565
    %v1567 = vpop.xlane.xlu0 %1566
    %v1568 = vld [vmem:[#allocation2] sm:$0x1]
    %v1570 = vlaneseq
    %v1571 = vshrl.u32 %v1570, 7
    %v1572 = vsub.s32 0, %v1571
    %v1573 = vrot.slane %v1568, %v1572
    %v1575 = vadd.f32 %v1567, %v1573
    %vm1576 = vcmask 7168
    %1577 = vst.msk [vmem:[%s9] sm:$0xff] %vm1576, %v1575
    // Predicated region
    $region46: #{tpu_custom_call.1} parent=1 // pred_check
      _
    $region47: #{tpu_custom_call.1} parent=1 // pred_check_branch
      %1579 = sbr.rel (0) target = $region49
    $region48: #{tpu_custom_call.1} parent=1 // pred_region
      _
    $region49: #{tpu_custom_call.1} parent=1 // pred_fallthru
      _
    // Predicated region
    $region50: #{tpu_custom_call.1} parent=1 // pred_check
      _
    $region51: #{tpu_custom_call.1} parent=1 // pred_check_branch
      %1581 = sbr.rel (0) target = $region53
    $region52: #{tpu_custom_call.1} parent=1 // pred_region
      _
    $region53: #{tpu_custom_call.1} parent=1 // pred_fallthru
      _
    %1582 = vsyncpa [#allocation4], 1
    %1583 = vsyncpa [#allocation6], 1

</llo_original>
